<compile_context>
chip_gen: v5e
topology: v5e:2x2
jax: 0.10.0
libtpu: 0.0.40
codegen_flags: <defaults>
</compile_context>

<pallas_src>
import math

import jax
import jax.numpy as jnp
from jax.experimental import pallas as pl
from jax.experimental.pallas import tpu as pltpu

# ----------------------------- model config ---------------------------------
N_NODES = 8
ATOM_FEATURE_SIZE = 6
NUM_CHANNELS = 4
NUM_DEGREES = 2
EDGE_DIM = 4
NUM_CHANNELS_OUT = NUM_CHANNELS * NUM_DEGREES   # 8
RADIAL_MID = 32                                  # per-MLP hidden; 4 MLPs stacked -> 128 lanes
LN_EPS = 1e-5
NORM_EPS = 1e-12
Y0 = 0.28209479177387814                         # real spherical harmonic Y_0
C1 = 0.4886025119029199                          # real spherical harmonic Y_1 coefficient

_VMEM = pltpu.MemorySpace.VMEM


def _ln(x, g, b, eps=LN_EPS):
    mu = jnp.mean(x, axis=-1, keepdims=True)
    var = jnp.mean((x - mu) ** 2, axis=-1, keepdims=True)
    return (x - mu) * jax.lax.rsqrt(var + eps) * g + b


# ----------------------------- fused Pallas kernel --------------------------
def tfn_fused_kernel(
        h0_ref, feat_ref, y1_ref, agg_ref, src_ref,
        rw1_ref, rb1_ref, rg1_ref, rbe1_ref,
        rw2_ref, rb2_ref, rg2_ref, rbe2_ref,
        rw3_ref, rb3_ref, aln_ref,
        t6x4_ref, t3x4_ref, t4x8_ref, rep4x3_ref,
        s1_ref, s2_ref, ssum3_ref,
        wself1_ref, wself2_ref,
        n0g_ref, n0be_ref, n0w_ref, n0b_ref,
        n1g_ref, n1be_ref, n1w_ref, n1b_ref,
        hw1_ref, hb1_ref, hw2_ref, hb2_ref,
        o_ref):
    f32 = jnp.float32
    dot = lambda a, b: jnp.dot(a, b, preferred_element_type=f32)

    h0 = h0_ref[...]        # [N, 6]   degree-0 input features
    feat = feat_ref[...]    # [E, 5]   edge features ++ radial distance
    y1 = y1_ref[...]        # [E, 3]   degree-1 spherical harmonics per edge
    agg = agg_ref[...]      # [N, E]   mean over incoming non-self edges
    src = src_ref[...]      # [E, N]   one-hot source-node selector per edge

    # ---- 4 radial MLPs stacked to one lane-dense 128-wide MLP ----
    # per-MLP LayerNorm == per-group(32) LayerNorm, done with a group-mean matmul.
    aln = aln_ref[...]      # [128, 128] block matrix, 1/32 within each 32-lane group

    def group_ln(h, g, b):
        mu = dot(h, aln)
        var = dot(h * h, aln) - mu * mu
        return (h - mu) * jax.lax.rsqrt(var + LN_EPS) * g + b

    h = dot(feat, rw1_ref[...]) + rb1_ref[...]                       # [E, 128]
    h = jnp.maximum(group_ln(h, rg1_ref[...], rbe1_ref[...]), 0.0)
    h = dot(h, rw2_ref[...]) + rb2_ref[...]                          # block-diag W2
    h = jnp.maximum(group_ln(h, rg2_ref[...], rbe2_ref[...]), 0.0)
    R = dot(h, rw3_ref[...]) + rb3_ref[...]                          # [E, 112], block-diag W3
    R1_00 = R[:, 0:24]      # conv1 (0->0): columns (co=4, ci=6), row-major, freq=1
    R1_01 = R[:, 24:48]     # conv1 (0->1)
    R2_00 = R[:, 48:80]     # conv2 (0->0): columns (co=8, ci=4)
    R2_10 = R[:, 80:112]    # conv2 (1->0)

    t6x4 = t6x4_ref[...]
    t3x4 = t3x4_ref[...]
    t4x8 = t4x8_ref[...]
    rep4x3 = rep4x3_ref[...]
    s1 = s1_ref[...]
    s2 = s2_ref[...]
    ssum3 = ssum3_ref[...]
    y1_t4 = dot(y1, t3x4)                    # [E, 12]: column k -> y1[:, k % 3]

    # ---- block0[0]: GConvSE3 in{0:6} -> mid{0:4,1:4}, self-interaction on degree 0 ----
    hs0 = dot(src, h0)                       # [E, 6]  source-node features per edge
    hs0_r = dot(hs0, t6x4)                   # [E, 24] tiled to match R's (co, ci) columns
    p00 = dot(R1_00 * hs0_r, s1)             # [E, 4]  sum over ci
    p01 = dot(R1_01 * hs0_r, s1)             # [E, 4]
    d0 = Y0 * dot(agg, p00) + dot(h0, wself1_ref[...])               # [N, 4]
    d1 = dot(agg, dot(p01, rep4x3) * y1_t4)                          # [N, 12] (c, m) m-minor

    # ---- block0[1]: GNormSE3 on mid fiber (norm -> LN -> ReLU -> Linear -> *phase) ----
    n0 = jnp.maximum(jnp.abs(d0), NORM_EPS)                          # degree-0 rep dim is 1
    ph0 = d0 / n0
    t0 = jnp.maximum(_ln(n0, n0g_ref[...], n0be_ref[...]), 0.0)
    d0 = (dot(t0, n0w_ref[...]) + n0b_ref[...]) * ph0                # [N, 4]

    n1 = jnp.maximum(jnp.sqrt(dot(d1 * d1, ssum3)), NORM_EPS)        # [N, 4] norm over rep dim
    ph1 = d1 / dot(n1, rep4x3)
    t1 = jnp.maximum(_ln(n1, n1g_ref[...], n1be_ref[...]), 0.0)
    d1 = dot(dot(t1, n1w_ref[...]) + n1b_ref[...], rep4x3) * ph1     # [N, 12]

    # ---- block0[2]: GConvSE3 mid{0:4,1:4} -> out{0:8}, self-interaction on degree 0 ----
    hs_d0 = dot(dot(src, d0), t4x8)          # [E, 32] tiled to (co=8, ci=4) columns
    hs_d1 = dot(src, d1)                     # [E, 12]
    p2_00 = dot(R2_00 * hs_d0, s2)           # [E, 8]
    dproj = dot(hs_d1 * y1_t4, ssum3)        # [E, 4]  sum_m h[., ci, m] * Y1[., m]
    p2_10 = dot(R2_10 * dot(dproj, t4x8), s2)                        # [E, 8]
    out2 = Y0 * dot(agg, p2_00) + dot(agg, p2_10) + dot(d0, wself2_ref[...])   # [N, 8]

    # ---- block1: GMaxPooling; block2: Linear -> ReLU -> Linear ----
    pooled = jnp.max(out2, axis=0, keepdims=True)                    # [1, 8]
    hh = jnp.maximum(dot(pooled, hw1_ref[...]) + hb1_ref[...], 0.0)
    o_ref[...] = dot(hh, hw2_ref[...]) + hb2_ref[...]                # [1, 1]


# ----------------------------- structural constants --------------------------
def _tile_mat(s, r):
    # [s, s*r]; (x @ M)[:, k] == x[:, k % s]
    k = jnp.arange(s * r)
    return (k[None, :] % s == jnp.arange(s)[:, None]).astype(jnp.float32)


def _rep_mat(s, r):
    # [s, s*r]; (x @ M)[:, k] == x[:, k // r]
    k = jnp.arange(s * r)
    return (k[None, :] // r == jnp.arange(s)[:, None]).astype(jnp.float32)


def _structural_constants(n):
    e = n * n
    eye = jnp.eye(n, dtype=jnp.float32)
    adj = (1.0 - eye) / (n - 1)
    agg = (eye[:, :, None] * adj[None, :, :]).reshape(n, e)   # [N, E]: mean over non-self in-edges
    src = jnp.tile(eye, (n, 1))                               # [E, N]: one-hot of src for e=dst*n+src
    groups = jnp.arange(4 * RADIAL_MID) // RADIAL_MID
    aln = (groups[:, None] == groups[None, :]).astype(jnp.float32) / RADIAL_MID
    return dict(
        agg=agg, src=src, aln=aln,
        t6x4=_tile_mat(6, 4), t3x4=_tile_mat(3, 4), t4x8=_tile_mat(4, 8),
        rep4x3=_rep_mat(4, 3),
        s1=_rep_mat(4, 6).T, s2=_rep_mat(8, 4).T, ssum3=_rep_mat(4, 3).T,
    )


# ----------------------------- parameter init --------------------------------
def _linear_params(key, fan_in, fan_out):
    kw, kb = jax.random.split(key)
    bound = 1.0 / math.sqrt(fan_in)
    w = jax.random.uniform(kw, (fan_in, fan_out), jnp.float32, -bound, bound)
    b = jax.random.uniform(kb, (1, fan_out), jnp.float32, -bound, bound)
    return w, b


def _radial_params(key, edge_dim, nc_in, nc_out, mid=RADIAL_MID):
    k1, k2, k3 = jax.random.split(key, 3)
    w1, b1 = _linear_params(k1, edge_dim + 1, mid)
    w2, b2 = _linear_params(k2, mid, mid)
    # num_freq == 1; output columns ordered (co, ci) row-major (RadialFunc view(out, 1, in, freq))
    w3, b3 = _linear_params(k3, mid, nc_out * nc_in)
    ones = jnp.ones((1, mid), jnp.float32)
    zeros = jnp.zeros((1, mid), jnp.float32)
    return dict(w1=w1, b1=b1, g1=ones, be1=zeros,
                w2=w2, b2=b2, g2=ones, be2=zeros, w3=w3, b3=b3)


def _gnorm_params(key, m):
    w, b = _linear_params(key, m, m)
    return dict(g=jnp.ones((1, m), jnp.float32), be=jnp.zeros((1, m), jnp.float32), w=w, b=b)


def init_tfn_params(key):
    ks = jax.random.split(key, 10)
    af, nc, nco, ed = ATOM_FEATURE_SIZE, NUM_CHANNELS, NUM_CHANNELS_OUT, EDGE_DIM
    params = {
        'conv1': {'rad_00': _radial_params(ks[0], ed, af, nc),
                  'rad_01': _radial_params(ks[1], ed, af, nc),
                  'self_0': jax.random.normal(ks[2], (nc, af), jnp.float32) / math.sqrt(af)},
        'norm1': {'0': _gnorm_params(ks[3], nc), '1': _gnorm_params(ks[4], nc)},
        'conv2': {'rad_00': _radial_params(ks[5], ed, nc, nco),
                  'rad_10': _radial_params(ks[6], ed, nc, nco),
                  'self_0': jax.random.normal(ks[7], (nco, nc), jnp.float32) / math.sqrt(nc)},
    }
    w1, b1 = _linear_params(ks[8], nco, nco)
    w2, b2 = _linear_params(ks[9], nco, 1)
    params['head'] = dict(w1=w1, b1=b1, w2=w2, b2=b2)
    return params


def pack_tfn_params(params):
    """Stack the 4 radial MLPs into one 128-wide MLP (block-diagonal hidden/output weights)
    and pre-transpose self-interaction weights. Run once outside jit."""
    rads = [params['conv1']['rad_00'], params['conv1']['rad_01'],
            params['conv2']['rad_00'], params['conv2']['rad_10']]
    cat = lambda name: jnp.concatenate([p[name] for p in rads], axis=1)
    bdiag = lambda name: jax.scipy.linalg.block_diag(*[p[name] for p in rads])
    return dict(
        rw1=cat('w1'), rb1=cat('b1'), rg1=cat('g1'), rbe1=cat('be1'),
        rw2=bdiag('w2'), rb2=cat('b2'), rg2=cat('g2'), rbe2=cat('be2'),
        rw3=bdiag('w3'), rb3=cat('b3'),
        wself1=params['conv1']['self_0'].T,     # [ci=6, co=4]
        wself2=params['conv2']['self_0'].T,     # [ci=4, co=8]
        n0_g=params['norm1']['0']['g'], n0_be=params['norm1']['0']['be'],
        n0_w=params['norm1']['0']['w'], n0_b=params['norm1']['0']['b'],
        n1_g=params['norm1']['1']['g'], n1_be=params['norm1']['1']['be'],
        n1_w=params['norm1']['1']['w'], n1_b=params['norm1']['1']['b'],
        hw1=params['head']['w1'], hb1=params['head']['b1'],
        hw2=params['head']['w2'], hb2=params['head']['b2'],
    )


# ----------------------------- forward pass ----------------------------------
@jax.jit
def tfn_forward(node_f, edge_w, pos, params):
    n = node_f.shape[0]
    e = n * n
    h0 = node_f[..., 0]                                        # [N, af]

    # ---- get_basis_and_r glue (tiny elementwise work; constants fold under jit) ----
    d_rel = pos[:, None, :] - pos[None, :, :]                  # [dst, src, 3]
    r = jnp.sqrt(jnp.sum(d_rel * d_rel, axis=-1, keepdims=True))
    dirv = d_rel / jnp.maximum(r, 1e-12)                       # self edges masked by agg
    y1 = (C1 * jnp.stack([dirv[..., 1], dirv[..., 2], dirv[..., 0]], axis=-1)).reshape(e, 3)
    feat = jnp.concatenate([edge_w.reshape(e, -1), r.reshape(e, 1)], axis=-1)   # [E, ED+1]

    c = _structural_constants(n)

    inputs = [
        h0, feat, y1, c['agg'], c['src'],
        params['rw1'], params['rb1'], params['rg1'], params['rbe1'],
        params['rw2'], params['rb2'], params['rg2'], params['rbe2'],
        params['rw3'], params['rb3'], c['aln'],
        c['t6x4'], c['t3x4'], c['t4x8'], c['rep4x3'],
        c['s1'], c['s2'], c['ssum3'],
        params['wself1'], params['wself2'],
        params['n0_g'], params['n0_be'], params['n0_w'], params['n0_b'],
        params['n1_g'], params['n1_be'], params['n1_w'], params['n1_b'],
        params['hw1'], params['hb1'], params['hw2'], params['hb2'],
    ]
    return pl.pallas_call(
        tfn_fused_kernel,
        out_shape=jax.ShapeDtypeStruct((1, 1), jnp.float32),
        in_specs=[pl.BlockSpec(memory_space=_VMEM) for _ in inputs],
        out_specs=pl.BlockSpec(memory_space=_VMEM),
    )(*inputs)


# ----------------------------- main -------------------------------------------
if __name__ == "__main__":
    key = jax.random.PRNGKey(0)
    k_pos, k_feat, k_edge, k_par = jax.random.split(key, 4)

    pos = jax.random.normal(k_pos, (N_NODES, 3), jnp.float32)
    node_f = jax.random.normal(k_feat, (N_NODES, ATOM_FEATURE_SIZE, 1), jnp.float32)
    edge_w = jax.random.normal(k_edge, (N_NODES, N_NODES, EDGE_DIM), jnp.float32)

    params = pack_tfn_params(init_tfn_params(k_par))

    out = tfn_forward(node_f, edge_w, pos, params)
    out = jax.block_until_ready(out)
    assert out.shape == (1, 1)
    assert bool(jnp.all(jnp.isfinite(out)))
    print("KERNEL_OK")
</pallas_src>

<mosaic_0001>
module attributes {stable_mosaic.version = 11 : i64} {
  func.func @tfn_fused_kernel(%arg0: memref<8x6xf32, #tpu.memory_space<vmem>>, %arg1: memref<64x5xf32, #tpu.memory_space<vmem>>, %arg2: memref<64x3xf32, #tpu.memory_space<vmem>>, %arg3: memref<8x64xf32, #tpu.memory_space<vmem>>, %arg4: memref<64x8xf32, #tpu.memory_space<vmem>>, %arg5: memref<5x128xf32, #tpu.memory_space<vmem>>, %arg6: memref<1x128xf32, #tpu.memory_space<vmem>>, %arg7: memref<1x128xf32, #tpu.memory_space<vmem>>, %arg8: memref<1x128xf32, #tpu.memory_space<vmem>>, %arg9: memref<128x128xf32, #tpu.memory_space<vmem>>, %arg10: memref<1x128xf32, #tpu.memory_space<vmem>>, %arg11: memref<1x128xf32, #tpu.memory_space<vmem>>, %arg12: memref<1x128xf32, #tpu.memory_space<vmem>>, %arg13: memref<128x112xf32, #tpu.memory_space<vmem>>, %arg14: memref<1x112xf32, #tpu.memory_space<vmem>>, %arg15: memref<128x128xf32, #tpu.memory_space<vmem>>, %arg16: memref<6x24xf32, #tpu.memory_space<vmem>>, %arg17: memref<3x12xf32, #tpu.memory_space<vmem>>, %arg18: memref<4x32xf32, #tpu.memory_space<vmem>>, %arg19: memref<4x12xf32, #tpu.memory_space<vmem>>, %arg20: memref<24x4xf32, #tpu.memory_space<vmem>>, %arg21: memref<32x8xf32, #tpu.memory_space<vmem>>, %arg22: memref<12x4xf32, #tpu.memory_space<vmem>>, %arg23: memref<6x4xf32, #tpu.memory_space<vmem>>, %arg24: memref<4x8xf32, #tpu.memory_space<vmem>>, %arg25: memref<1x4xf32, #tpu.memory_space<vmem>>, %arg26: memref<1x4xf32, #tpu.memory_space<vmem>>, %arg27: memref<4x4xf32, #tpu.memory_space<vmem>>, %arg28: memref<1x4xf32, #tpu.memory_space<vmem>>, %arg29: memref<1x4xf32, #tpu.memory_space<vmem>>, %arg30: memref<1x4xf32, #tpu.memory_space<vmem>>, %arg31: memref<4x4xf32, #tpu.memory_space<vmem>>, %arg32: memref<1x4xf32, #tpu.memory_space<vmem>>, %arg33: memref<8x8xf32, #tpu.memory_space<vmem>>, %arg34: memref<1x8xf32, #tpu.memory_space<vmem>>, %arg35: memref<8x1xf32, #tpu.memory_space<vmem>>, %arg36: memref<1x1xf32, #tpu.memory_space<vmem>>, %arg37: memref<1x1xf32, #tpu.memory_space<vmem>>) attributes {dimension_semantics = [], scalar_prefetch = 0 : i64, scratch_operands = 0 : i64, tpu.core_type = #tpu.core_type<tc>} {
    %c0 = arith.constant 0 : index
    %c0_0 = arith.constant 0 : index
    %0 = vector.load %arg0[%c0, %c0_0] : memref<8x6xf32, #tpu.memory_space<vmem>>, vector<8x6xf32>
    %c0_1 = arith.constant 0 : index
    %c0_2 = arith.constant 0 : index
    %1 = vector.load %arg1[%c0_1, %c0_2] : memref<64x5xf32, #tpu.memory_space<vmem>>, vector<64x5xf32>
    %c0_3 = arith.constant 0 : index
    %c0_4 = arith.constant 0 : index
    %2 = vector.load %arg2[%c0_3, %c0_4] : memref<64x3xf32, #tpu.memory_space<vmem>>, vector<64x3xf32>
    %c0_5 = arith.constant 0 : index
    %c0_6 = arith.constant 0 : index
    %3 = vector.load %arg3[%c0_5, %c0_6] : memref<8x64xf32, #tpu.memory_space<vmem>>, vector<8x64xf32>
    %c0_7 = arith.constant 0 : index
    %c0_8 = arith.constant 0 : index
    %4 = vector.load %arg4[%c0_7, %c0_8] : memref<64x8xf32, #tpu.memory_space<vmem>>, vector<64x8xf32>
    %c0_9 = arith.constant 0 : index
    %c0_10 = arith.constant 0 : index
    %5 = vector.load %arg15[%c0_9, %c0_10] : memref<128x128xf32, #tpu.memory_space<vmem>>, vector<128x128xf32>
    %c0_11 = arith.constant 0 : index
    %c0_12 = arith.constant 0 : index
    %6 = vector.load %arg5[%c0_11, %c0_12] : memref<5x128xf32, #tpu.memory_space<vmem>>, vector<5x128xf32>
    %cst = arith.constant dense<0.000000e+00> : vector<64x128xf32>
    %7 = tpu.matmul %1, %6, %cst {dimension_numbers = #tpu.dot_dimension_numbers<[1], [0], [0], [1], [0, 0, 1, 1], [], []>} : vector<64x5xf32>, vector<5x128xf32>, vector<64x128xf32> -> vector<64x128xf32>
    %c0_13 = arith.constant 0 : index
    %c0_14 = arith.constant 0 : index
    %8 = vector.load %arg6[%c0_13, %c0_14] : memref<1x128xf32, #tpu.memory_space<vmem>>, vector<1x128xf32>
    %9 = vector.broadcast %8 : vector<1x128xf32> to vector<64x128xf32>
    %10 = arith.addf %7, %9 : vector<64x128xf32>
    %c0_15 = arith.constant 0 : index
    %c0_16 = arith.constant 0 : index
    %11 = vector.load %arg7[%c0_15, %c0_16] : memref<1x128xf32, #tpu.memory_space<vmem>>, vector<1x128xf32>
    %c0_17 = arith.constant 0 : index
    %c0_18 = arith.constant 0 : index
    %12 = vector.load %arg8[%c0_17, %c0_18] : memref<1x128xf32, #tpu.memory_space<vmem>>, vector<1x128xf32>
    %cst_19 = arith.constant dense<0.000000e+00> : vector<64x128xf32>
    %13 = tpu.matmul %10, %5, %cst_19 {dimension_numbers = #tpu.dot_dimension_numbers<[1], [0], [0], [1], [0, 0, 1, 1], [], []>} : vector<64x128xf32>, vector<128x128xf32>, vector<64x128xf32> -> vector<64x128xf32>
    %14 = arith.mulf %10, %10 : vector<64x128xf32>
    %cst_20 = arith.constant dense<0.000000e+00> : vector<64x128xf32>
    %15 = tpu.matmul %14, %5, %cst_20 {dimension_numbers = #tpu.dot_dimension_numbers<[1], [0], [0], [1], [0, 0, 1, 1], [], []>} : vector<64x128xf32>, vector<128x128xf32>, vector<64x128xf32> -> vector<64x128xf32>
    %16 = arith.mulf %13, %13 : vector<64x128xf32>
    %17 = arith.subf %15, %16 : vector<64x128xf32>
    %18 = arith.subf %10, %13 : vector<64x128xf32>
    %cst_21 = arith.constant 9.99999974E-6 : f32
    %19 = vector.broadcast %cst_21 : f32 to vector<64x128xf32>
    %20 = arith.addf %17, %19 : vector<64x128xf32>
    %21 = math.rsqrt %20 : vector<64x128xf32>
    %22 = arith.mulf %18, %21 : vector<64x128xf32>
    %23 = vector.broadcast %11 : vector<1x128xf32> to vector<64x128xf32>
    %24 = arith.mulf %22, %23 : vector<64x128xf32>
    %25 = vector.broadcast %12 : vector<1x128xf32> to vector<64x128xf32>
    %26 = arith.addf %24, %25 : vector<64x128xf32>
    %cst_22 = arith.constant 0.000000e+00 : f32
    %27 = vector.broadcast %cst_22 : f32 to vector<64x128xf32>
    %28 = arith.maximumf %26, %27 : vector<64x128xf32>
    %c0_23 = arith.constant 0 : index
    %c0_24 = arith.constant 0 : index
    %29 = vector.load %arg9[%c0_23, %c0_24] : memref<128x128xf32, #tpu.memory_space<vmem>>, vector<128x128xf32>
    %cst_25 = arith.constant dense<0.000000e+00> : vector<64x128xf32>
    %30 = tpu.matmul %28, %29, %cst_25 {dimension_numbers = #tpu.dot_dimension_numbers<[1], [0], [0], [1], [0, 0, 1, 1], [], []>} : vector<64x128xf32>, vector<128x128xf32>, vector<64x128xf32> -> vector<64x128xf32>
    %c0_26 = arith.constant 0 : index
    %c0_27 = arith.constant 0 : index
    %31 = vector.load %arg10[%c0_26, %c0_27] : memref<1x128xf32, #tpu.memory_space<vmem>>, vector<1x128xf32>
    %32 = vector.broadcast %31 : vector<1x128xf32> to vector<64x128xf32>
    %33 = arith.addf %30, %32 : vector<64x128xf32>
    %c0_28 = arith.constant 0 : index
    %c0_29 = arith.constant 0 : index
    %34 = vector.load %arg11[%c0_28, %c0_29] : memref<1x128xf32, #tpu.memory_space<vmem>>, vector<1x128xf32>
    %c0_30 = arith.constant 0 : index
    %c0_31 = arith.constant 0 : index
    %35 = vector.load %arg12[%c0_30, %c0_31] : memref<1x128xf32, #tpu.memory_space<vmem>>, vector<1x128xf32>
    %cst_32 = arith.constant dense<0.000000e+00> : vector<64x128xf32>
    %36 = tpu.matmul %33, %5, %cst_32 {dimension_numbers = #tpu.dot_dimension_numbers<[1], [0], [0], [1], [0, 0, 1, 1], [], []>} : vector<64x128xf32>, vector<128x128xf32>, vector<64x128xf32> -> vector<64x128xf32>
    %37 = arith.mulf %33, %33 : vector<64x128xf32>
    %cst_33 = arith.constant dense<0.000000e+00> : vector<64x128xf32>
    %38 = tpu.matmul %37, %5, %cst_33 {dimension_numbers = #tpu.dot_dimension_numbers<[1], [0], [0], [1], [0, 0, 1, 1], [], []>} : vector<64x128xf32>, vector<128x128xf32>, vector<64x128xf32> -> vector<64x128xf32>
    %39 = arith.mulf %36, %36 : vector<64x128xf32>
    %40 = arith.subf %38, %39 : vector<64x128xf32>
    %41 = arith.subf %33, %36 : vector<64x128xf32>
    %cst_34 = arith.constant 9.99999974E-6 : f32
    %42 = vector.broadcast %cst_34 : f32 to vector<64x128xf32>
    %43 = arith.addf %40, %42 : vector<64x128xf32>
    %44 = math.rsqrt %43 : vector<64x128xf32>
    %45 = arith.mulf %41, %44 : vector<64x128xf32>
    %46 = vector.broadcast %34 : vector<1x128xf32> to vector<64x128xf32>
    %47 = arith.mulf %45, %46 : vector<64x128xf32>
    %48 = vector.broadcast %35 : vector<1x128xf32> to vector<64x128xf32>
    %49 = arith.addf %47, %48 : vector<64x128xf32>
    %cst_35 = arith.constant 0.000000e+00 : f32
    %50 = vector.broadcast %cst_35 : f32 to vector<64x128xf32>
    %51 = arith.maximumf %49, %50 : vector<64x128xf32>
    %c0_36 = arith.constant 0 : index
    %c0_37 = arith.constant 0 : index
    %52 = vector.load %arg13[%c0_36, %c0_37] : memref<128x112xf32, #tpu.memory_space<vmem>>, vector<128x112xf32>
    %cst_38 = arith.constant dense<0.000000e+00> : vector<64x112xf32>
    %53 = tpu.matmul %51, %52, %cst_38 {dimension_numbers = #tpu.dot_dimension_numbers<[1], [0], [0], [1], [0, 0, 1, 1], [], []>} : vector<64x128xf32>, vector<128x112xf32>, vector<64x112xf32> -> vector<64x112xf32>
    %c0_39 = arith.constant 0 : index
    %c0_40 = arith.constant 0 : index
    %54 = vector.load %arg14[%c0_39, %c0_40] : memref<1x112xf32, #tpu.memory_space<vmem>>, vector<1x112xf32>
    %55 = vector.broadcast %54 : vector<1x112xf32> to vector<64x112xf32>
    %56 = arith.addf %53, %55 : vector<64x112xf32>
    %57 = vector.extract_strided_slice %56 {offsets = [0, 0], sizes = [64, 24], strides = [1, 1]} : vector<64x112xf32> to vector<64x24xf32>
    %58 = vector.extract_strided_slice %56 {offsets = [0, 24], sizes = [64, 24], strides = [1, 1]} : vector<64x112xf32> to vector<64x24xf32>
    %59 = vector.extract_strided_slice %56 {offsets = [0, 48], sizes = [64, 32], strides = [1, 1]} : vector<64x112xf32> to vector<64x32xf32>
    %60 = vector.extract_strided_slice %56 {offsets = [0, 80], sizes = [64, 32], strides = [1, 1]} : vector<64x112xf32> to vector<64x32xf32>
    %c0_41 = arith.constant 0 : index
    %c0_42 = arith.constant 0 : index
    %61 = vector.load %arg16[%c0_41, %c0_42] : memref<6x24xf32, #tpu.memory_space<vmem>>, vector<6x24xf32>
    %c0_43 = arith.constant 0 : index
    %c0_44 = arith.constant 0 : index
    %62 = vector.load %arg17[%c0_43, %c0_44] : memref<3x12xf32, #tpu.memory_space<vmem>>, vector<3x12xf32>
    %c0_45 = arith.constant 0 : index
    %c0_46 = arith.constant 0 : index
    %63 = vector.load %arg18[%c0_45, %c0_46] : memref<4x32xf32, #tpu.memory_space<vmem>>, vector<4x32xf32>
    %c0_47 = arith.constant 0 : index
    %c0_48 = arith.constant 0 : index
    %64 = vector.load %arg19[%c0_47, %c0_48] : memref<4x12xf32, #tpu.memory_space<vmem>>, vector<4x12xf32>
    %c0_49 = arith.constant 0 : index
    %c0_50 = arith.constant 0 : index
    %65 = vector.load %arg20[%c0_49, %c0_50] : memref<24x4xf32, #tpu.memory_space<vmem>>, vector<24x4xf32>
    %c0_51 = arith.constant 0 : index
    %c0_52 = arith.constant 0 : index
    %66 = vector.load %arg21[%c0_51, %c0_52] : memref<32x8xf32, #tpu.memory_space<vmem>>, vector<32x8xf32>
    %c0_53 = arith.constant 0 : index
    %c0_54 = arith.constant 0 : index
    %67 = vector.load %arg22[%c0_53, %c0_54] : memref<12x4xf32, #tpu.memory_space<vmem>>, vector<12x4xf32>
    %cst_55 = arith.constant dense<0.000000e+00> : vector<64x12xf32>
    %68 = tpu.matmul %2, %62, %cst_55 {dimension_numbers = #tpu.dot_dimension_numbers<[1], [0], [0], [1], [0, 0, 1, 1], [], []>} : vector<64x3xf32>, vector<3x12xf32>, vector<64x12xf32> -> vector<64x12xf32>
    %cst_56 = arith.constant dense<0.000000e+00> : vector<64x6xf32>
    %69 = tpu.matmul %4, %0, %cst_56 {dimension_numbers = #tpu.dot_dimension_numbers<[1], [0], [0], [1], [0, 0, 1, 1], [], []>} : vector<64x8xf32>, vector<8x6xf32>, vector<64x6xf32> -> vector<64x6xf32>
    %cst_57 = arith.constant dense<0.000000e+00> : vector<64x24xf32>
    %70 = tpu.matmul %69, %61, %cst_57 {dimension_numbers = #tpu.dot_dimension_numbers<[1], [0], [0], [1], [0, 0, 1, 1], [], []>} : vector<64x6xf32>, vector<6x24xf32>, vector<64x24xf32> -> vector<64x24xf32>
    %71 = arith.mulf %57, %70 : vector<64x24xf32>
    %cst_58 = arith.constant dense<0.000000e+00> : vector<64x4xf32>
    %72 = tpu.matmul %71, %65, %cst_58 {dimension_numbers = #tpu.dot_dimension_numbers<[1], [0], [0], [1], [0, 0, 1, 1], [], []>} : vector<64x24xf32>, vector<24x4xf32>, vector<64x4xf32> -> vector<64x4xf32>
    %73 = arith.mulf %58, %70 : vector<64x24xf32>
    %cst_59 = arith.constant dense<0.000000e+00> : vector<64x4xf32>
    %74 = tpu.matmul %73, %65, %cst_59 {dimension_numbers = #tpu.dot_dimension_numbers<[1], [0], [0], [1], [0, 0, 1, 1], [], []>} : vector<64x24xf32>, vector<24x4xf32>, vector<64x4xf32> -> vector<64x4xf32>
    %cst_60 = arith.constant dense<0.000000e+00> : vector<8x4xf32>
    %75 = tpu.matmul %3, %72, %cst_60 {dimension_numbers = #tpu.dot_dimension_numbers<[1], [0], [0], [1], [0, 0, 1, 1], [], []>} : vector<8x64xf32>, vector<64x4xf32>, vector<8x4xf32> -> vector<8x4xf32>
    %cst_61 = arith.constant 0.282094806 : f32
    %76 = vector.broadcast %cst_61 : f32 to vector<8x4xf32>
    %77 = arith.mulf %76, %75 : vector<8x4xf32>
    %c0_62 = arith.constant 0 : index
    %c0_63 = arith.constant 0 : index
    %78 = vector.load %arg23[%c0_62, %c0_63] : memref<6x4xf32, #tpu.memory_space<vmem>>, vector<6x4xf32>
    %cst_64 = arith.constant dense<0.000000e+00> : vector<8x4xf32>
    %79 = tpu.matmul %0, %78, %cst_64 {dimension_numbers = #tpu.dot_dimension_numbers<[1], [0], [0], [1], [0, 0, 1, 1], [], []>} : vector<8x6xf32>, vector<6x4xf32>, vector<8x4xf32> -> vector<8x4xf32>
    %80 = arith.addf %77, %79 : vector<8x4xf32>
    %cst_65 = arith.constant dense<0.000000e+00> : vector<64x12xf32>
    %81 = tpu.matmul %74, %64, %cst_65 {dimension_numbers = #tpu.dot_dimension_numbers<[1], [0], [0], [1], [0, 0, 1, 1], [], []>} : vector<64x4xf32>, vector<4x12xf32>, vector<64x12xf32> -> vector<64x12xf32>
    %82 = arith.mulf %81, %68 : vector<64x12xf32>
    %cst_66 = arith.constant dense<0.000000e+00> : vector<8x12xf32>
    %83 = tpu.matmul %3, %82, %cst_66 {dimension_numbers = #tpu.dot_dimension_numbers<[1], [0], [0], [1], [0, 0, 1, 1], [], []>} : vector<8x64xf32>, vector<64x12xf32>, vector<8x12xf32> -> vector<8x12xf32>
    %84 = math.absf %80 : vector<8x4xf32>
    %cst_67 = arith.constant 9.99999996E-13 : f32
    %85 = vector.broadcast %cst_67 : f32 to vector<8x4xf32>
    %86 = arith.maximumf %84, %85 : vector<8x4xf32>
    %87 = arith.divf %80, %86 : vector<8x4xf32>
    %c0_68 = arith.constant 0 : index
    %c0_69 = arith.constant 0 : index
    %88 = vector.load %arg25[%c0_68, %c0_69] : memref<1x4xf32, #tpu.memory_space<vmem>>, vector<1x4xf32>
    %c0_70 = arith.constant 0 : index
    %c0_71 = arith.constant 0 : index
    %89 = vector.load %arg26[%c0_70, %c0_71] : memref<1x4xf32, #tpu.memory_space<vmem>>, vector<1x4xf32>
    %cst_72 = arith.constant dense<0.000000e+00> : vector<8xf32>
    %90 = vector.multi_reduction <add>, %86, %cst_72 [1] : vector<8x4xf32> to vector<8xf32>
    %91 = vector.shape_cast %90 : vector<8xf32> to vector<8x1xf32>
    %cst_73 = arith.constant 4.000000e+00 : f32
    %92 = vector.broadcast %cst_73 : f32 to vector<8x1xf32>
    %93 = arith.divf %91, %92 : vector<8x1xf32>
    %94 = vector.broadcast %93 : vector<8x1xf32> to vector<8x4xf32>
    %95 = arith.subf %86, %94 : vector<8x4xf32>
    %96 = arith.mulf %95, %95 : vector<8x4xf32>
    %cst_74 = arith.constant dense<0.000000e+00> : vector<8xf32>
    %97 = vector.multi_reduction <add>, %96, %cst_74 [1] : vector<8x4xf32> to vector<8xf32>
    %98 = vector.shape_cast %97 : vector<8xf32> to vector<8x1xf32>
    %cst_75 = arith.constant 4.000000e+00 : f32
    %99 = vector.broadcast %cst_75 : f32 to vector<8x1xf32>
    %100 = arith.divf %98, %99 : vector<8x1xf32>
    %101 = vector.broadcast %93 : vector<8x1xf32> to vector<8x4xf32>
    %102 = arith.subf %86, %101 : vector<8x4xf32>
    %cst_76 = arith.constant 9.99999974E-6 : f32
    %103 = vector.broadcast %cst_76 : f32 to vector<8x1xf32>
    %104 = arith.addf %100, %103 : vector<8x1xf32>
    %105 = math.rsqrt %104 : vector<8x1xf32>
    %106 = vector.broadcast %105 : vector<8x1xf32> to vector<8x4xf32>
    %107 = arith.mulf %102, %106 : vector<8x4xf32>
    %108 = vector.broadcast %88 : vector<1x4xf32> to vector<8x4xf32>
    %109 = arith.mulf %107, %108 : vector<8x4xf32>
    %110 = vector.broadcast %89 : vector<1x4xf32> to vector<8x4xf32>
    %111 = arith.addf %109, %110 : vector<8x4xf32>
    %cst_77 = arith.constant 0.000000e+00 : f32
    %112 = vector.broadcast %cst_77 : f32 to vector<8x4xf32>
    %113 = arith.maximumf %111, %112 : vector<8x4xf32>
    %c0_78 = arith.constant 0 : index
    %c0_79 = arith.constant 0 : index
    %114 = vector.load %arg27[%c0_78, %c0_79] : memref<4x4xf32, #tpu.memory_space<vmem>>, vector<4x4xf32>
    %cst_80 = arith.constant dense<0.000000e+00> : vector<8x4xf32>
    %115 = tpu.matmul %113, %114, %cst_80 {dimension_numbers = #tpu.dot_dimension_numbers<[1], [0], [0], [1], [0, 0, 1, 1], [], []>} : vector<8x4xf32>, vector<4x4xf32>, vector<8x4xf32> -> vector<8x4xf32>
    %c0_81 = arith.constant 0 : index
    %c0_82 = arith.constant 0 : index
    %116 = vector.load %arg28[%c0_81, %c0_82] : memref<1x4xf32, #tpu.memory_space<vmem>>, vector<1x4xf32>
    %117 = vector.broadcast %116 : vector<1x4xf32> to vector<8x4xf32>
    %118 = arith.addf %115, %117 : vector<8x4xf32>
    %119 = arith.mulf %118, %87 : vector<8x4xf32>
    %120 = arith.mulf %83, %83 : vector<8x12xf32>
    %cst_83 = arith.constant dense<0.000000e+00> : vector<8x4xf32>
    %121 = tpu.matmul %120, %67, %cst_83 {dimension_numbers = #tpu.dot_dimension_numbers<[1], [0], [0], [1], [0, 0, 1, 1], [], []>} : vector<8x12xf32>, vector<12x4xf32>, vector<8x4xf32> -> vector<8x4xf32>
    %122 = math.sqrt %121 : vector<8x4xf32>
    %cst_84 = arith.constant 9.99999996E-13 : f32
    %123 = vector.broadcast %cst_84 : f32 to vector<8x4xf32>
    %124 = arith.maximumf %122, %123 : vector<8x4xf32>
    %cst_85 = arith.constant dense<0.000000e+00> : vector<8x12xf32>
    %125 = tpu.matmul %124, %64, %cst_85 {dimension_numbers = #tpu.dot_dimension_numbers<[1], [0], [0], [1], [0, 0, 1, 1], [], []>} : vector<8x4xf32>, vector<4x12xf32>, vector<8x12xf32> -> vector<8x12xf32>
    %126 = arith.divf %83, %125 : vector<8x12xf32>
    %c0_86 = arith.constant 0 : index
    %c0_87 = arith.constant 0 : index
    %127 = vector.load %arg29[%c0_86, %c0_87] : memref<1x4xf32, #tpu.memory_space<vmem>>, vector<1x4xf32>
    %c0_88 = arith.constant 0 : index
    %c0_89 = arith.constant 0 : index
    %128 = vector.load %arg30[%c0_88, %c0_89] : memref<1x4xf32, #tpu.memory_space<vmem>>, vector<1x4xf32>
    %cst_90 = arith.constant dense<0.000000e+00> : vector<8xf32>
    %129 = vector.multi_reduction <add>, %124, %cst_90 [1] : vector<8x4xf32> to vector<8xf32>
    %130 = vector.shape_cast %129 : vector<8xf32> to vector<8x1xf32>
    %cst_91 = arith.constant 4.000000e+00 : f32
    %131 = vector.broadcast %cst_91 : f32 to vector<8x1xf32>
    %132 = arith.divf %130, %131 : vector<8x1xf32>
    %133 = vector.broadcast %132 : vector<8x1xf32> to vector<8x4xf32>
    %134 = arith.subf %124, %133 : vector<8x4xf32>
    %135 = arith.mulf %134, %134 : vector<8x4xf32>
    %cst_92 = arith.constant dense<0.000000e+00> : vector<8xf32>
    %136 = vector.multi_reduction <add>, %135, %cst_92 [1] : vector<8x4xf32> to vector<8xf32>
    %137 = vector.shape_cast %136 : vector<8xf32> to vector<8x1xf32>
    %cst_93 = arith.constant 4.000000e+00 : f32
    %138 = vector.broadcast %cst_93 : f32 to vector<8x1xf32>
    %139 = arith.divf %137, %138 : vector<8x1xf32>
    %140 = vector.broadcast %132 : vector<8x1xf32> to vector<8x4xf32>
    %141 = arith.subf %124, %140 : vector<8x4xf32>
    %cst_94 = arith.constant 9.99999974E-6 : f32
    %142 = vector.broadcast %cst_94 : f32 to vector<8x1xf32>
    %143 = arith.addf %139, %142 : vector<8x1xf32>
    %144 = math.rsqrt %143 : vector<8x1xf32>
    %145 = vector.broadcast %144 : vector<8x1xf32> to vector<8x4xf32>
    %146 = arith.mulf %141, %145 : vector<8x4xf32>
    %147 = vector.broadcast %127 : vector<1x4xf32> to vector<8x4xf32>
    %148 = arith.mulf %146, %147 : vector<8x4xf32>
    %149 = vector.broadcast %128 : vector<1x4xf32> to vector<8x4xf32>
    %150 = arith.addf %148, %149 : vector<8x4xf32>
    %cst_95 = arith.constant 0.000000e+00 : f32
    %151 = vector.broadcast %cst_95 : f32 to vector<8x4xf32>
    %152 = arith.maximumf %150, %151 : vector<8x4xf32>
    %c0_96 = arith.constant 0 : index
    %c0_97 = arith.constant 0 : index
    %153 = vector.load %arg31[%c0_96, %c0_97] : memref<4x4xf32, #tpu.memory_space<vmem>>, vector<4x4xf32>
    %cst_98 = arith.constant dense<0.000000e+00> : vector<8x4xf32>
    %154 = tpu.matmul %152, %153, %cst_98 {dimension_numbers = #tpu.dot_dimension_numbers<[1], [0], [0], [1], [0, 0, 1, 1], [], []>} : vector<8x4xf32>, vector<4x4xf32>, vector<8x4xf32> -> vector<8x4xf32>
    %c0_99 = arith.constant 0 : index
    %c0_100 = arith.constant 0 : index
    %155 = vector.load %arg32[%c0_99, %c0_100] : memref<1x4xf32, #tpu.memory_space<vmem>>, vector<1x4xf32>
    %156 = vector.broadcast %155 : vector<1x4xf32> to vector<8x4xf32>
    %157 = arith.addf %154, %156 : vector<8x4xf32>
    %cst_101 = arith.constant dense<0.000000e+00> : vector<8x12xf32>
    %158 = tpu.matmul %157, %64, %cst_101 {dimension_numbers = #tpu.dot_dimension_numbers<[1], [0], [0], [1], [0, 0, 1, 1], [], []>} : vector<8x4xf32>, vector<4x12xf32>, vector<8x12xf32> -> vector<8x12xf32>
    %159 = arith.mulf %158, %126 : vector<8x12xf32>
    %cst_102 = arith.constant dense<0.000000e+00> : vector<64x4xf32>
    %160 = tpu.matmul %4, %119, %cst_102 {dimension_numbers = #tpu.dot_dimension_numbers<[1], [0], [0], [1], [0, 0, 1, 1], [], []>} : vector<64x8xf32>, vector<8x4xf32>, vector<64x4xf32> -> vector<64x4xf32>
    %cst_103 = arith.constant dense<0.000000e+00> : vector<64x32xf32>
    %161 = tpu.matmul %160, %63, %cst_103 {dimension_numbers = #tpu.dot_dimension_numbers<[1], [0], [0], [1], [0, 0, 1, 1], [], []>} : vector<64x4xf32>, vector<4x32xf32>, vector<64x32xf32> -> vector<64x32xf32>
    %cst_104 = arith.constant dense<0.000000e+00> : vector<64x12xf32>
    %162 = tpu.matmul %4, %159, %cst_104 {dimension_numbers = #tpu.dot_dimension_numbers<[1], [0], [0], [1], [0, 0, 1, 1], [], []>} : vector<64x8xf32>, vector<8x12xf32>, vector<64x12xf32> -> vector<64x12xf32>
    %163 = arith.mulf %59, %161 : vector<64x32xf32>
    %cst_105 = arith.constant dense<0.000000e+00> : vector<64x8xf32>
    %164 = tpu.matmul %163, %66, %cst_105 {dimension_numbers = #tpu.dot_dimension_numbers<[1], [0], [0], [1], [0, 0, 1, 1], [], []>} : vector<64x32xf32>, vector<32x8xf32>, vector<64x8xf32> -> vector<64x8xf32>
    %165 = arith.mulf %162, %68 : vector<64x12xf32>
    %cst_106 = arith.constant dense<0.000000e+00> : vector<64x4xf32>
    %166 = tpu.matmul %165, %67, %cst_106 {dimension_numbers = #tpu.dot_dimension_numbers<[1], [0], [0], [1], [0, 0, 1, 1], [], []>} : vector<64x12xf32>, vector<12x4xf32>, vector<64x4xf32> -> vector<64x4xf32>
    %cst_107 = arith.constant dense<0.000000e+00> : vector<64x32xf32>
    %167 = tpu.matmul %166, %63, %cst_107 {dimension_numbers = #tpu.dot_dimension_numbers<[1], [0], [0], [1], [0, 0, 1, 1], [], []>} : vector<64x4xf32>, vector<4x32xf32>, vector<64x32xf32> -> vector<64x32xf32>
    %168 = arith.mulf %60, %167 : vector<64x32xf32>
    %cst_108 = arith.constant dense<0.000000e+00> : vector<64x8xf32>
    %169 = tpu.matmul %168, %66, %cst_108 {dimension_numbers = #tpu.dot_dimension_numbers<[1], [0], [0], [1], [0, 0, 1, 1], [], []>} : vector<64x32xf32>, vector<32x8xf32>, vector<64x8xf32> -> vector<64x8xf32>
    %cst_109 = arith.constant dense<0.000000e+00> : vector<8x8xf32>
    %170 = tpu.matmul %3, %164, %cst_109 {dimension_numbers = #tpu.dot_dimension_numbers<[1], [0], [0], [1], [0, 0, 1, 1], [], []>} : vector<8x64xf32>, vector<64x8xf32>, vector<8x8xf32> -> vector<8x8xf32>
    %cst_110 = arith.constant 0.282094806 : f32
    %171 = vector.broadcast %cst_110 : f32 to vector<8x8xf32>
    %172 = arith.mulf %171, %170 : vector<8x8xf32>
    %cst_111 = arith.constant dense<0.000000e+00> : vector<8x8xf32>
    %173 = tpu.matmul %3, %169, %cst_111 {dimension_numbers = #tpu.dot_dimension_numbers<[1], [0], [0], [1], [0, 0, 1, 1], [], []>} : vector<8x64xf32>, vector<64x8xf32>, vector<8x8xf32> -> vector<8x8xf32>
    %174 = arith.addf %172, %173 : vector<8x8xf32>
    %c0_112 = arith.constant 0 : index
    %c0_113 = arith.constant 0 : index
    %175 = vector.load %arg24[%c0_112, %c0_113] : memref<4x8xf32, #tpu.memory_space<vmem>>, vector<4x8xf32>
    %cst_114 = arith.constant dense<0.000000e+00> : vector<8x8xf32>
    %176 = tpu.matmul %119, %175, %cst_114 {dimension_numbers = #tpu.dot_dimension_numbers<[1], [0], [0], [1], [0, 0, 1, 1], [], []>} : vector<8x4xf32>, vector<4x8xf32>, vector<8x8xf32> -> vector<8x8xf32>
    %177 = arith.addf %174, %176 : vector<8x8xf32>
    %cst_115 = arith.constant dense<0xFF800000> : vector<8xf32>
    %178 = vector.multi_reduction <maximumf>, %177, %cst_115 [0] : vector<8x8xf32> to vector<8xf32>
    %179 = vector.shape_cast %178 : vector<8xf32> to vector<1x8xf32>
    %c0_116 = arith.constant 0 : index
    %c0_117 = arith.constant 0 : index
    %180 = vector.load %arg33[%c0_116, %c0_117] : memref<8x8xf32, #tpu.memory_space<vmem>>, vector<8x8xf32>
    %cst_118 = arith.constant dense<0.000000e+00> : vector<1x8xf32>
    %181 = tpu.matmul %179, %180, %cst_118 {dimension_numbers = #tpu.dot_dimension_numbers<[1], [0], [0], [1], [0, 0, 1, 1], [], []>} : vector<1x8xf32>, vector<8x8xf32>, vector<1x8xf32> -> vector<1x8xf32>
    %c0_119 = arith.constant 0 : index
    %c0_120 = arith.constant 0 : index
    %182 = vector.load %arg34[%c0_119, %c0_120] : memref<1x8xf32, #tpu.memory_space<vmem>>, vector<1x8xf32>
    %183 = arith.addf %181, %182 : vector<1x8xf32>
    %cst_121 = arith.constant 0.000000e+00 : f32
    %184 = vector.broadcast %cst_121 : f32 to vector<1x8xf32>
    %185 = arith.maximumf %183, %184 : vector<1x8xf32>
    %c0_122 = arith.constant 0 : index
    %c0_123 = arith.constant 0 : index
    %186 = vector.load %arg35[%c0_122, %c0_123] : memref<8x1xf32, #tpu.memory_space<vmem>>, vector<8x1xf32>
    %cst_124 = arith.constant dense<0.000000e+00> : vector<1x1xf32>
    %187 = tpu.matmul %185, %186, %cst_124 {dimension_numbers = #tpu.dot_dimension_numbers<[1], [0], [0], [1], [0, 0, 1, 1], [], []>} : vector<1x8xf32>, vector<8x1xf32>, vector<1x1xf32> -> vector<1x1xf32>
    %c0_125 = arith.constant 0 : index
    %c0_126 = arith.constant 0 : index
    %188 = vector.load %arg36[%c0_125, %c0_126] : memref<1x1xf32, #tpu.memory_space<vmem>>, vector<1x1xf32>
    %189 = arith.addf %187, %188 : vector<1x1xf32>
    %c0_127 = arith.constant 0 : index
    %c0_128 = arith.constant 0 : index
    %190 = vector.load %arg37[%c0_127, %c0_128] : memref<1x1xf32, #tpu.memory_space<vmem>>, vector<1x1xf32>
    tpu.vector_store %arg37[%c0_127, %c0_128], %189 {strides = array<i32>} : memref<1x1xf32, #tpu.memory_space<vmem>>, vector<1x1xf32>,
    return
  }
}

</mosaic_0001>

<llo_original>
// kernel: tfn_forward.1
$region0: #{tfn_forward.1}
  #allocation0 [shape = 'u32[]', space=smem, size = 0x4, offset = 0x4, fixed_abs, tag = 'smem constant byte address 0x4 - core index']
  #allocation1 [shape = 'u32[72,128]{1,0:T(1,128)}', space=vmem, size = 0x9000, scoped, tag = 'internal scratch']
  #allocation2 [shape = 'f32[1,1]{1,0:T(1,128)S(1)}', space=vmem, size = 0x200, scoped, tag = 'scoped memory for tfn_forward.1']
  %s0 = inlined_call_operand.smem [shape: u32[38], index: -1, kind: input, shape index: {}]
  %s1 = sld [smem:[%s0]]
  %s2 = scalar_lea.smem %s0, 1
  %s3 = sld [smem:[%s2]]
  %s4 = scalar_lea.smem %s0, 2
  %s5 = sld [smem:[%s4]]
  %s6 = scalar_lea.smem %s0, 3
  %s7 = sld [smem:[%s6]]
  %s8 = scalar_lea.smem %s0, 4
  %s9 = sld [smem:[%s8]]
  %s10 = scalar_lea.smem %s0, 5
  %s11 = sld [smem:[%s10]]
  %s12 = scalar_lea.smem %s0, 6
  %s13 = sld [smem:[%s12]]
  %s14 = scalar_lea.smem %s0, 7
  %s15 = sld [smem:[%s14]]
  %s16 = scalar_lea.smem %s0, 8
  %s17 = sld [smem:[%s16]]
  %s18 = scalar_lea.smem %s0, 9
  %s19 = sld [smem:[%s18]]
  %s20 = scalar_lea.smem %s0, 10
  %s21 = sld [smem:[%s20]]
  %s22 = scalar_lea.smem %s0, 11
  %s23 = sld [smem:[%s22]]
  %s24 = scalar_lea.smem %s0, 12
  %s25 = sld [smem:[%s24]]
  %s26 = scalar_lea.smem %s0, 13
  %s27 = sld [smem:[%s26]]
  %s28 = scalar_lea.smem %s0, 14
  %s29 = sld [smem:[%s28]]
  %s30 = scalar_lea.smem %s0, 15
  %s31 = sld [smem:[%s30]]
  %s32 = scalar_lea.smem %s0, 16
  %s33 = sld [smem:[%s32]]
  %s34 = scalar_lea.smem %s0, 17
  %s35 = sld [smem:[%s34]]
  %s36 = scalar_lea.smem %s0, 18
  %s37 = sld [smem:[%s36]]
  %s38 = scalar_lea.smem %s0, 19
  %s39 = sld [smem:[%s38]]
  %s40 = scalar_lea.smem %s0, 20
  %s41 = sld [smem:[%s40]]
  %s42 = scalar_lea.smem %s0, 21
  %s43 = sld [smem:[%s42]]
  %s44 = scalar_lea.smem %s0, 22
  %s45 = sld [smem:[%s44]]
  %s46 = scalar_lea.smem %s0, 23
  %s47 = sld [smem:[%s46]]
  %s48 = scalar_lea.smem %s0, 24
  %s49 = sld [smem:[%s48]]
  %s50 = scalar_lea.smem %s0, 25
  %s51 = sld [smem:[%s50]]
  %s52 = scalar_lea.smem %s0, 26
  %s53 = sld [smem:[%s52]]
  %s54 = scalar_lea.smem %s0, 27
  %s55 = sld [smem:[%s54]]
  %s56 = scalar_lea.smem %s0, 28
  %s57 = sld [smem:[%s56]]
  %s58 = scalar_lea.smem %s0, 29
  %s59 = sld [smem:[%s58]]
  %s60 = scalar_lea.smem %s0, 30
  %s61 = sld [smem:[%s60]]
  %s62 = scalar_lea.smem %s0, 31
  %s63 = sld [smem:[%s62]]
  %s64 = scalar_lea.smem %s0, 32
  %s65 = sld [smem:[%s64]]
  %s66 = scalar_lea.smem %s0, 33
  %s67 = sld [smem:[%s66]]
  %s68 = scalar_lea.smem %s0, 34
  %s69 = sld [smem:[%s68]]
  %s70 = scalar_lea.smem %s0, 35
  %s71 = sld [smem:[%s70]]
  %s72 = scalar_lea.smem %s0, 36
  %s73 = sld [smem:[%s72]]
  %s74 = scalar_lea.smem %s0, 37
  %s75 = sld [smem:[%s74]]
  %s76 = sld [smem:[#allocation0]]
  $region158: #{tfn_forward.1} parent=0
    _
  %s78 = ssub.s32 1, %s76
  %s79 = scalar_select 0, %s78, %s76
  %v80 = vstv %s73
  %81 = vst [vmem:[#allocation2] sm:$0x1] %v80
  $region1: #{tfn_forward.1} parent=0
    #allocation3 [shape = 'u8[512]{0}', space=vmem, size = 0x400, scoped, tag = 'output window, operand 0, single buffered']
    #allocation4 [shape = 's32[1]{0}', space=sflag, size = 0x4, scoped, tag = 'scoped memory for tfn_forward.1']
    %82 = vsyncpa [#allocation4], 0
    // Predicated region
    $region2: #{tfn_forward.1} parent=1 // pred_check
      _
    $region3: #{tfn_forward.1} parent=1 // pred_check_branch
      %84 = sbr.rel (0) target = $region5
    $region4: #{tfn_forward.1} parent=1 // pred_region
      _
    $region5: #{tfn_forward.1} parent=1 // pred_fallthru
      _
    // Predicated region
    $region6: #{tfn_forward.1} parent=1 // pred_check
      _
    $region7: #{tfn_forward.1} parent=1 // pred_check_branch
      %86 = sbr.rel (0) target = $region9
    $region8: #{tfn_forward.1} parent=1 // pred_region
      _
    $region9: #{tfn_forward.1} parent=1 // pred_fallthru
      _
    // Predicated region
    $region10: #{tfn_forward.1} parent=1 // pred_check
      _
    $region11: #{tfn_forward.1} parent=1 // pred_check_branch
      %88 = sbr.rel (0) target = $region13
    $region12: #{tfn_forward.1} parent=1 // pred_region
      _
    $region13: #{tfn_forward.1} parent=1 // pred_fallthru
      _
    // Predicated region
    $region14: #{tfn_forward.1} parent=1 // pred_check
      _
    $region15: #{tfn_forward.1} parent=1 // pred_check_branch
      %90 = sbr.rel (0) target = $region17
    $region16: #{tfn_forward.1} parent=1 // pred_region
      _
    $region17: #{tfn_forward.1} parent=1 // pred_fallthru
      _
    // Predicated region
    $region18: #{tfn_forward.1} parent=1 // pred_check
      _
    $region19: #{tfn_forward.1} parent=1 // pred_check_branch
      %92 = sbr.rel (0) target = $region21
    $region20: #{tfn_forward.1} parent=1 // pred_region
      _
    $region21: #{tfn_forward.1} parent=1 // pred_fallthru
      _
    // Predicated region
    $region22: #{tfn_forward.1} parent=1 // pred_check
      _
    $region23: #{tfn_forward.1} parent=1 // pred_check_branch
      %94 = sbr.rel (0) target = $region25
    $region24: #{tfn_forward.1} parent=1 // pred_region
      _
    $region25: #{tfn_forward.1} parent=1 // pred_fallthru
      _
    // Predicated region
    $region26: #{tfn_forward.1} parent=1 // pred_check
      _
    $region27: #{tfn_forward.1} parent=1 // pred_check_branch
      %96 = sbr.rel (0) target = $region29
    $region28: #{tfn_forward.1} parent=1 // pred_region
      _
    $region29: #{tfn_forward.1} parent=1 // pred_fallthru
      _
    // Predicated region
    $region30: #{tfn_forward.1} parent=1 // pred_check
      _
    $region31: #{tfn_forward.1} parent=1 // pred_check_branch
      %98 = sbr.rel (0) target = $region33
    $region32: #{tfn_forward.1} parent=1 // pred_region
      _
    $region33: #{tfn_forward.1} parent=1 // pred_fallthru
      _
    // Predicated region
    $region34: #{tfn_forward.1} parent=1 // pred_check
      _
    $region35: #{tfn_forward.1} parent=1 // pred_check_branch
      %100 = sbr.rel (0) target = $region37
    $region36: #{tfn_forward.1} parent=1 // pred_region
      _
    $region37: #{tfn_forward.1} parent=1 // pred_fallthru
      _
    // Predicated region
    $region38: #{tfn_forward.1} parent=1 // pred_check
      _
    $region39: #{tfn_forward.1} parent=1 // pred_check_branch
      %102 = sbr.rel (0) target = $region41
    $region40: #{tfn_forward.1} parent=1 // pred_region
      _
    $region41: #{tfn_forward.1} parent=1 // pred_fallthru
      _
    // Predicated region
    $region42: #{tfn_forward.1} parent=1 // pred_check
      _
    $region43: #{tfn_forward.1} parent=1 // pred_check_branch
      %104 = sbr.rel (0) target = $region45
    $region44: #{tfn_forward.1} parent=1 // pred_region
      _
    $region45: #{tfn_forward.1} parent=1 // pred_fallthru
      _
    // Predicated region
    $region46: #{tfn_forward.1} parent=1 // pred_check
      _
    $region47: #{tfn_forward.1} parent=1 // pred_check_branch
      %106 = sbr.rel (0) target = $region49
    $region48: #{tfn_forward.1} parent=1 // pred_region
      _
    $region49: #{tfn_forward.1} parent=1 // pred_fallthru
      _
    // Predicated region
    $region50: #{tfn_forward.1} parent=1 // pred_check
      _
    $region51: #{tfn_forward.1} parent=1 // pred_check_branch
      %108 = sbr.rel (0) target = $region53
    $region52: #{tfn_forward.1} parent=1 // pred_region
      _
    $region53: #{tfn_forward.1} parent=1 // pred_fallthru
      _
    // Predicated region
    $region54: #{tfn_forward.1} parent=1 // pred_check
      _
    $region55: #{tfn_forward.1} parent=1 // pred_check_branch
      %110 = sbr.rel (0) target = $region57
    $region56: #{tfn_forward.1} parent=1 // pred_region
      _
    $region57: #{tfn_forward.1} parent=1 // pred_fallthru
      _
    // Predicated region
    $region58: #{tfn_forward.1} parent=1 // pred_check
      _
    $region59: #{tfn_forward.1} parent=1 // pred_check_branch
      %112 = sbr.rel (0) target = $region61
    $region60: #{tfn_forward.1} parent=1 // pred_region
      _
    $region61: #{tfn_forward.1} parent=1 // pred_fallthru
      _
    // Predicated region
    $region62: #{tfn_forward.1} parent=1 // pred_check
      _
    $region63: #{tfn_forward.1} parent=1 // pred_check_branch
      %114 = sbr.rel (0) target = $region65
    $region64: #{tfn_forward.1} parent=1 // pred_region
      _
    $region65: #{tfn_forward.1} parent=1 // pred_fallthru
      _
    // Predicated region
    $region66: #{tfn_forward.1} parent=1 // pred_check
      _
    $region67: #{tfn_forward.1} parent=1 // pred_check_branch
      %116 = sbr.rel (0) target = $region69
    $region68: #{tfn_forward.1} parent=1 // pred_region
      _
    $region69: #{tfn_forward.1} parent=1 // pred_fallthru
      _
    // Predicated region
    $region70: #{tfn_forward.1} parent=1 // pred_check
      _
    $region71: #{tfn_forward.1} parent=1 // pred_check_branch
      %118 = sbr.rel (0) target = $region73
    $region72: #{tfn_forward.1} parent=1 // pred_region
      _
    $region73: #{tfn_forward.1} parent=1 // pred_fallthru
      _
    // Predicated region
    $region74: #{tfn_forward.1} parent=1 // pred_check
      _
    $region75: #{tfn_forward.1} parent=1 // pred_check_branch
      %120 = sbr.rel (0) target = $region77
    $region76: #{tfn_forward.1} parent=1 // pred_region
      _
    $region77: #{tfn_forward.1} parent=1 // pred_fallthru
      _
    // Predicated region
    $region78: #{tfn_forward.1} parent=1 // pred_check
      _
    $region79: #{tfn_forward.1} parent=1 // pred_check_branch
      %122 = sbr.rel (0) target = $region81
    $region80: #{tfn_forward.1} parent=1 // pred_region
      _
    $region81: #{tfn_forward.1} parent=1 // pred_fallthru
      _
    // Predicated region
    $region82: #{tfn_forward.1} parent=1 // pred_check
      _
    $region83: #{tfn_forward.1} parent=1 // pred_check_branch
      %124 = sbr.rel (0) target = $region85
    $region84: #{tfn_forward.1} parent=1 // pred_region
      _
    $region85: #{tfn_forward.1} parent=1 // pred_fallthru
      _
    // Predicated region
    $region86: #{tfn_forward.1} parent=1 // pred_check
      _
    $region87: #{tfn_forward.1} parent=1 // pred_check_branch
      %126 = sbr.rel (0) target = $region89
    $region88: #{tfn_forward.1} parent=1 // pred_region
      _
    $region89: #{tfn_forward.1} parent=1 // pred_fallthru
      _
    // Predicated region
    $region90: #{tfn_forward.1} parent=1 // pred_check
      _
    $region91: #{tfn_forward.1} parent=1 // pred_check_branch
      %128 = sbr.rel (0) target = $region93
    $region92: #{tfn_forward.1} parent=1 // pred_region
      _
    $region93: #{tfn_forward.1} parent=1 // pred_fallthru
      _
    // Predicated region
    $region94: #{tfn_forward.1} parent=1 // pred_check
      _
    $region95: #{tfn_forward.1} parent=1 // pred_check_branch
      %130 = sbr.rel (0) target = $region97
    $region96: #{tfn_forward.1} parent=1 // pred_region
      _
    $region97: #{tfn_forward.1} parent=1 // pred_fallthru
      _
    // Predicated region
    $region98: #{tfn_forward.1} parent=1 // pred_check
      _
    $region99: #{tfn_forward.1} parent=1 // pred_check_branch
      %132 = sbr.rel (0) target = $region101
    $region100: #{tfn_forward.1} parent=1 // pred_region
      _
    $region101: #{tfn_forward.1} parent=1 // pred_fallthru
      _
    // Predicated region
    $region102: #{tfn_forward.1} parent=1 // pred_check
      _
    $region103: #{tfn_forward.1} parent=1 // pred_check_branch
      %134 = sbr.rel (0) target = $region105
    $region104: #{tfn_forward.1} parent=1 // pred_region
      _
    $region105: #{tfn_forward.1} parent=1 // pred_fallthru
      _
    // Predicated region
    $region106: #{tfn_forward.1} parent=1 // pred_check
      _
    $region107: #{tfn_forward.1} parent=1 // pred_check_branch
      %136 = sbr.rel (0) target = $region109
    $region108: #{tfn_forward.1} parent=1 // pred_region
      _
    $region109: #{tfn_forward.1} parent=1 // pred_fallthru
      _
    // Predicated region
    $region110: #{tfn_forward.1} parent=1 // pred_check
      _
    $region111: #{tfn_forward.1} parent=1 // pred_check_branch
      %138 = sbr.rel (0) target = $region113
    $region112: #{tfn_forward.1} parent=1 // pred_region
      _
    $region113: #{tfn_forward.1} parent=1 // pred_fallthru
      _
    // Predicated region
    $region114: #{tfn_forward.1} parent=1 // pred_check
      _
    $region115: #{tfn_forward.1} parent=1 // pred_check_branch
      %140 = sbr.rel (0) target = $region117
    $region116: #{tfn_forward.1} parent=1 // pred_region
      _
    $region117: #{tfn_forward.1} parent=1 // pred_fallthru
      _
    // Predicated region
    $region118: #{tfn_forward.1} parent=1 // pred_check
      _
    $region119: #{tfn_forward.1} parent=1 // pred_check_branch
      %142 = sbr.rel (0) target = $region121
    $region120: #{tfn_forward.1} parent=1 // pred_region
      _
    $region121: #{tfn_forward.1} parent=1 // pred_fallthru
      _
    // Predicated region
    $region122: #{tfn_forward.1} parent=1 // pred_check
      _
    $region123: #{tfn_forward.1} parent=1 // pred_check_branch
      %144 = sbr.rel (0) target = $region125
    $region124: #{tfn_forward.1} parent=1 // pred_region
      _
    $region125: #{tfn_forward.1} parent=1 // pred_fallthru
      _
    // Predicated region
    $region126: #{tfn_forward.1} parent=1 // pred_check
      _
    $region127: #{tfn_forward.1} parent=1 // pred_check_branch
      %146 = sbr.rel (0) target = $region129
    $region128: #{tfn_forward.1} parent=1 // pred_region
      _
    $region129: #{tfn_forward.1} parent=1 // pred_fallthru
      _
    // Predicated region
    $region130: #{tfn_forward.1} parent=1 // pred_check
      _
    $region131: #{tfn_forward.1} parent=1 // pred_check_branch
      %148 = sbr.rel (0) target = $region133
    $region132: #{tfn_forward.1} parent=1 // pred_region
      _
    $region133: #{tfn_forward.1} parent=1 // pred_fallthru
      _
    // Predicated region
    $region134: #{tfn_forward.1} parent=1 // pred_check
      _
    $region135: #{tfn_forward.1} parent=1 // pred_check_branch
      %150 = sbr.rel (0) target = $region137
    $region136: #{tfn_forward.1} parent=1 // pred_region
      _
    $region137: #{tfn_forward.1} parent=1 // pred_fallthru
      _
    // Predicated region
    $region138: #{tfn_forward.1} parent=1 // pred_check
      _
    $region139: #{tfn_forward.1} parent=1 // pred_check_branch
      %152 = sbr.rel (0) target = $region141
    $region140: #{tfn_forward.1} parent=1 // pred_region
      _
    $region141: #{tfn_forward.1} parent=1 // pred_fallthru
      _
    // Predicated region
    $region142: #{tfn_forward.1} parent=1 // pred_check
      _
    $region143: #{tfn_forward.1} parent=1 // pred_check_branch
      %154 = sbr.rel (0) target = $region145
    $region144: #{tfn_forward.1} parent=1 // pred_region
      _
    $region145: #{tfn_forward.1} parent=1 // pred_fallthru
      _
    // Predicated region
    $region146: #{tfn_forward.1} parent=1 // pred_check
      _
    $region147: #{tfn_forward.1} parent=1 // pred_check_branch
      %156 = sbr.rel (0) target = $region149
    $region148: #{tfn_forward.1} parent=1 // pred_region
      _
    $region149: #{tfn_forward.1} parent=1 // pred_fallthru
      _
    %v157 = vld [vmem:[%s1] sm:$0xff]
    %v158 = vld [vmem:[%s3] sm:$0xff]
    %v159 = vld [vmem:[%s3 + $0x8] sm:$0xff]
    %v160 = vld [vmem:[%s3 + $0x10] sm:$0xff]
    %v161 = vld [vmem:[%s3 + $0x18] sm:$0xff]
    %v162 = vld [vmem:[%s3 + $0x20] sm:$0xff]
    %v163 = vld [vmem:[%s3 + $0x28] sm:$0xff]
    %v164 = vld [vmem:[%s3 + $0x30] sm:$0xff]
    %v165 = vld [vmem:[%s3 + $0x38] sm:$0xff]
    %v166 = vld [vmem:[%s5] sm:$0xff]
    %v167 = vld [vmem:[%s5 + $0x8] sm:$0xff]
    %v168 = vld [vmem:[%s5 + $0x10] sm:$0xff]
    %v169 = vld [vmem:[%s5 + $0x18] sm:$0xff]
    %v170 = vld [vmem:[%s5 + $0x20] sm:$0xff]
    %v171 = vld [vmem:[%s5 + $0x28] sm:$0xff]
    %v172 = vld [vmem:[%s5 + $0x30] sm:$0xff]
    %v173 = vld [vmem:[%s5 + $0x38] sm:$0xff]
    %v174 = vld [vmem:[%s7] sm:$0xff]
    %v175 = vld [vmem:[%s9] sm:$0xff]
    %v176 = vld [vmem:[%s9 + $0x8] sm:$0xff]
    %v177 = vld [vmem:[%s9 + $0x10] sm:$0xff]
    %v178 = vld [vmem:[%s9 + $0x18] sm:$0xff]
    %v179 = vld [vmem:[%s9 + $0x20] sm:$0xff]
    %v180 = vld [vmem:[%s9 + $0x28] sm:$0xff]
    %v181 = vld [vmem:[%s9 + $0x30] sm:$0xff]
    %v182 = vld [vmem:[%s9 + $0x38] sm:$0xff]
    %v183 = vld [vmem:[%s31] sm:$0xff]
    %v184 = vld [vmem:[%s31 + $0x8] sm:$0xff]
    %v185 = vld [vmem:[%s31 + $0x10] sm:$0xff]
    %v186 = vld [vmem:[%s31 + $0x18] sm:$0xff]
    %v187 = vld [vmem:[%s31 + $0x20] sm:$0xff]
    %v188 = vld [vmem:[%s31 + $0x28] sm:$0xff]
    %v189 = vld [vmem:[%s31 + $0x30] sm:$0xff]
    %v190 = vld [vmem:[%s31 + $0x38] sm:$0xff]
    %v191 = vld [vmem:[%s31 + $0x40] sm:$0xff]
    %v192 = vld [vmem:[%s31 + $0x48] sm:$0xff]
    %v193 = vld [vmem:[%s31 + $0x50] sm:$0xff]
    %v194 = vld [vmem:[%s31 + $0x58] sm:$0xff]
    %v195 = vld [vmem:[%s31 + $0x60] sm:$0xff]
    %v196 = vld [vmem:[%s31 + $0x68] sm:$0xff]
    %v197 = vld [vmem:[%s31 + $0x70] sm:$0xff]
    %v198 = vld [vmem:[%s31 + $0x78] sm:$0xff]
    %v199 = vld [vmem:[%s11] sm:$0x1f]
    %v200 = vld [vmem:[%s13] sm:$0x1]
    %v202 = vperm.slane %v200, 0
    %vm204 = vcmask 39936
    %v206 = vsel %vm204, %v158, 0
    %v209 = vsel %vm204, %v159, 0
    %v212 = vsel %vm204, %v160, 0
    %v215 = vsel %vm204, %v161, 0
    %v218 = vsel %vm204, %v162, 0
    %v221 = vsel %vm204, %v163, 0
    %v224 = vsel %vm204, %v164, 0
    %v227 = vsel %vm204, %v165, 0
    %vm229 = vcmask 1044480
    %v231 = vsel %vm229, %v199, 0
    %233 = vmatpush.msra.mxu0 0.0
    %234 = vmatpush.msra.mxu0 0.0
    %235 = vmatpush.msra.mxu0 0.0
    %236 = vmatpush.msra.mxu0 0.0
    %237 = vmatpush.msra.mxu0 0.0
    %238 = vmatpush.msra.mxu0 0.0
    %239 = vmatpush.msra.mxu0 0.0
    %240 = vmatpush.msra.mxu0 0.0
    %241 = vmatpush.msra.mxu0 0.0
    %242 = vmatpush.msra.mxu0 0.0
    %243 = vmatpush.msra.mxu0 0.0
    %244 = vmatpush.msra.mxu0 0.0
    %245 = vmatpush.msra.mxu0 0.0
    %246 = vmatpush.msra.mxu0 0.0
    %247 = vmatpush.msra.mxu0 0.0
    %248 = vmatpush.msra.mxu0 %v231
    %249 = vmatmul.f32.gmra.mxu0 %v206
    %v250 = vpop.f32.mrf.mxu0
    %v251 = vadd.f32 %v202, %v250
    %252 = vmatmul.f32.gmra.mxu0 %v209
    %v253 = vpop.f32.mrf.mxu0
    %v254 = vadd.f32 %v202, %v253
    %255 = vmatmul.f32.gmra.mxu0 %v212
    %v256 = vpop.f32.mrf.mxu0
    %v257 = vadd.f32 %v202, %v256
    %258 = vmatmul.f32.gmra.mxu0 %v215
    %v259 = vpop.f32.mrf.mxu0
    %v260 = vadd.f32 %v202, %v259
    %261 = vmatmul.f32.gmra.mxu0 %v218
    %v262 = vpop.f32.mrf.mxu0
    %v263 = vadd.f32 %v202, %v262
    %264 = vmatmul.f32.gmra.mxu0 %v221
    %v265 = vpop.f32.mrf.mxu0
    %v266 = vadd.f32 %v202, %v265
    %267 = vmatmul.f32.gmra.mxu0 %v224
    %v268 = vpop.f32.mrf.mxu0
    %v269 = vadd.f32 %v202, %v268
    %270 = vmatmul.f32.gmra.mxu0 %v227
    %v271 = vpop.f32.mrf.mxu0
    %v272 = vadd.f32 %v202, %v271
    %273 = vdwg.mxu0
    %v274 = vld [vmem:[%s15] sm:$0x1]
    %v275 = vld [vmem:[%s17] sm:$0x1]
    %276 = vmatpush.msra.mxu0 %v198
    %277 = vmatpush.msra.mxu0 %v197
    %278 = vmatpush.msra.mxu0 %v196
    %279 = vmatpush.msra.mxu0 %v195
    %280 = vmatpush.msra.mxu0 %v194
    %281 = vmatpush.msra.mxu0 %v193
    %282 = vmatpush.msra.mxu0 %v192
    %283 = vmatpush.msra.mxu0 %v191
    %284 = vmatpush.msra.mxu0 %v190
    %285 = vmatpush.msra.mxu0 %v189
    %286 = vmatpush.msra.mxu0 %v188
    %287 = vmatpush.msra.mxu0 %v187
    %288 = vmatpush.msra.mxu0 %v186
    %289 = vmatpush.msra.mxu0 %v185
    %290 = vmatpush.msra.mxu0 %v184
    %291 = vmatpush.msra.mxu0 %v183
    %292 = vmatmul.f32.gmra.mxu0 %v251
    %v293 = vpop.f32.mrf.mxu0
    %v294 = vadd.f32 0.0, %v293
    %295 = vmatmul.f32.gmra.mxu0 %v254
    %v296 = vpop.f32.mrf.mxu0
    %v297 = vadd.f32 0.0, %v296
    %298 = vmatmul.f32.gmra.mxu0 %v257
    %v299 = vpop.f32.mrf.mxu0
    %v300 = vadd.f32 0.0, %v299
    %301 = vmatmul.f32.gmra.mxu0 %v260
    %v302 = vpop.f32.mrf.mxu0
    %v303 = vadd.f32 0.0, %v302
    %304 = vmatmul.f32.gmra.mxu0 %v263
    %v305 = vpop.f32.mrf.mxu0
    %v306 = vadd.f32 0.0, %v305
    %307 = vmatmul.f32.gmra.mxu0 %v266
    %v308 = vpop.f32.mrf.mxu0
    %v309 = vadd.f32 0.0, %v308
    %310 = vmatmul.f32.gmra.mxu0 %v269
    %v311 = vpop.f32.mrf.mxu0
    %v312 = vadd.f32 0.0, %v311
    %313 = vmatmul.f32.gmra.mxu0 %v272
    %v314 = vpop.f32.mrf.mxu0
    %v315 = vadd.f32 0.0, %v314
    %316 = vdwg.mxu0
    %v317 = vmul.f32 %v251, %v251
    %v318 = vmul.f32 %v254, %v254
    %v319 = vmul.f32 %v257, %v257
    %v320 = vmul.f32 %v260, %v260
    %v321 = vmul.f32 %v263, %v263
    %v322 = vmul.f32 %v266, %v266
    %v323 = vmul.f32 %v269, %v269
    %v324 = vmul.f32 %v272, %v272
    %325 = vmatpush.msra.mxu0 %v198
    %326 = vmatpush.msra.mxu0 %v197
    %327 = vmatpush.msra.mxu0 %v196
    %328 = vmatpush.msra.mxu0 %v195
    %329 = vmatpush.msra.mxu0 %v194
    %330 = vmatpush.msra.mxu0 %v193
    %331 = vmatpush.msra.mxu0 %v192
    %332 = vmatpush.msra.mxu0 %v191
    %333 = vmatpush.msra.mxu0 %v190
    %334 = vmatpush.msra.mxu0 %v189
    %335 = vmatpush.msra.mxu0 %v188
    %336 = vmatpush.msra.mxu0 %v187
    %337 = vmatpush.msra.mxu0 %v186
    %338 = vmatpush.msra.mxu0 %v185
    %339 = vmatpush.msra.mxu0 %v184
    %340 = vmatpush.msra.mxu0 %v183
    %341 = vmatmul.f32.gmra.mxu0 %v317
    %v342 = vpop.f32.mrf.mxu0
    %v343 = vadd.f32 0.0, %v342
    %344 = vmatmul.f32.gmra.mxu0 %v318
    %v345 = vpop.f32.mrf.mxu0
    %v346 = vadd.f32 0.0, %v345
    %347 = vmatmul.f32.gmra.mxu0 %v319
    %v348 = vpop.f32.mrf.mxu0
    %v349 = vadd.f32 0.0, %v348
    %350 = vmatmul.f32.gmra.mxu0 %v320
    %v351 = vpop.f32.mrf.mxu0
    %v352 = vadd.f32 0.0, %v351
    %353 = vmatmul.f32.gmra.mxu0 %v321
    %v354 = vpop.f32.mrf.mxu0
    %v355 = vadd.f32 0.0, %v354
    %356 = vmatmul.f32.gmra.mxu0 %v322
    %v357 = vpop.f32.mrf.mxu0
    %v358 = vadd.f32 0.0, %v357
    %359 = vmatmul.f32.gmra.mxu0 %v323
    %v360 = vpop.f32.mrf.mxu0
    %v361 = vadd.f32 0.0, %v360
    %362 = vmatmul.f32.gmra.mxu0 %v324
    %v363 = vpop.f32.mrf.mxu0
    %v364 = vadd.f32 0.0, %v363
    %365 = vdwg.mxu0
    %v366 = vmul.f32 %v294, %v294
    %v367 = vmul.f32 %v297, %v297
    %v368 = vmul.f32 %v300, %v300
    %v369 = vmul.f32 %v303, %v303
    %v370 = vmul.f32 %v306, %v306
    %v371 = vmul.f32 %v309, %v309
    %v372 = vmul.f32 %v312, %v312
    %v373 = vmul.f32 %v315, %v315
    %v374 = vsub.f32 %v343, %v366
    %v375 = vsub.f32 %v346, %v367
    %v376 = vsub.f32 %v349, %v368
    %v377 = vsub.f32 %v352, %v369
    %v378 = vsub.f32 %v355, %v370
    %v379 = vsub.f32 %v358, %v371
    %v380 = vsub.f32 %v361, %v372
    %v381 = vsub.f32 %v364, %v373
    %v382 = vsub.f32 %v251, %v294
    %v383 = vsub.f32 %v254, %v297
    %v384 = vsub.f32 %v257, %v300
    %v385 = vsub.f32 %v260, %v303
    %v386 = vsub.f32 %v263, %v306
    %v387 = vsub.f32 %v266, %v309
    %v388 = vsub.f32 %v269, %v312
    %v389 = vsub.f32 %v272, %v315
    %v390 = vadd.f32 %v374, 1e-05
    %v391 = vadd.f32 %v375, 1e-05
    %v392 = vadd.f32 %v376, 1e-05
    %v393 = vadd.f32 %v377, 1e-05
    %v394 = vadd.f32 %v378, 1e-05
    %v395 = vadd.f32 %v379, 1e-05
    %v396 = vadd.f32 %v380, 1e-05
    %v397 = vadd.f32 %v381, 1e-05
    %v398 = vrsqrt.pop %v390
    %v399 = vmul.f32 %v398, %v390
    %v400 = vmul.f32 %v399, %v398
    %v401 = vmul.f32 0.5, %v400
    %v402 = vsub.f32 1.5, %v401
    %v403 = vmul.f32 %v398, %v402
    %vm404 = vweird.f32 %v390
    %vm405 = vweird.f32 %v398
    %vm406 = vmor %vm404, %vm405
    %v407 = vsel %vm406, %v398, %v403
    %v408 = vrsqrt.pop %v391
    %v409 = vmul.f32 %v408, %v391
    %v410 = vmul.f32 %v409, %v408
    %v411 = vmul.f32 0.5, %v410
    %v412 = vsub.f32 1.5, %v411
    %v413 = vmul.f32 %v408, %v412
    %vm414 = vweird.f32 %v391
    %vm415 = vweird.f32 %v408
    %vm416 = vmor %vm414, %vm415
    %v417 = vsel %vm416, %v408, %v413
    %v418 = vrsqrt.pop %v392
    %v419 = vmul.f32 %v418, %v392
    %v420 = vmul.f32 %v419, %v418
    %v421 = vmul.f32 0.5, %v420
    %v422 = vsub.f32 1.5, %v421
    %v423 = vmul.f32 %v418, %v422
    %vm424 = vweird.f32 %v392
    %vm425 = vweird.f32 %v418
    %vm426 = vmor %vm424, %vm425
    %v427 = vsel %vm426, %v418, %v423
    %v428 = vrsqrt.pop %v393
    %v429 = vmul.f32 %v428, %v393
    %v430 = vmul.f32 %v429, %v428
    %v431 = vmul.f32 0.5, %v430
    %v432 = vsub.f32 1.5, %v431
    %v433 = vmul.f32 %v428, %v432
    %vm434 = vweird.f32 %v393
    %vm435 = vweird.f32 %v428
    %vm436 = vmor %vm434, %vm435
    %v437 = vsel %vm436, %v428, %v433
    %v438 = vrsqrt.pop %v394
    %v439 = vmul.f32 %v438, %v394
    %v440 = vmul.f32 %v439, %v438
    %v441 = vmul.f32 0.5, %v440
    %v442 = vsub.f32 1.5, %v441
    %v443 = vmul.f32 %v438, %v442
    %vm444 = vweird.f32 %v394
    %vm445 = vweird.f32 %v438
    %vm446 = vmor %vm444, %vm445
    %v447 = vsel %vm446, %v438, %v443
    %v448 = vrsqrt.pop %v395
    %v449 = vmul.f32 %v448, %v395
    %v450 = vmul.f32 %v449, %v448
    %v451 = vmul.f32 0.5, %v450
    %v452 = vsub.f32 1.5, %v451
    %v453 = vmul.f32 %v448, %v452
    %vm454 = vweird.f32 %v395
    %vm455 = vweird.f32 %v448
    %vm456 = vmor %vm454, %vm455
    %v457 = vsel %vm456, %v448, %v453
    %v458 = vrsqrt.pop %v396
    %v459 = vmul.f32 %v458, %v396
    %v460 = vmul.f32 %v459, %v458
    %v461 = vmul.f32 0.5, %v460
    %v462 = vsub.f32 1.5, %v461
    %v463 = vmul.f32 %v458, %v462
    %vm464 = vweird.f32 %v396
    %vm465 = vweird.f32 %v458
    %vm466 = vmor %vm464, %vm465
    %v467 = vsel %vm466, %v458, %v463
    %v468 = vrsqrt.pop %v397
    %v469 = vmul.f32 %v468, %v397
    %v470 = vmul.f32 %v469, %v468
    %v471 = vmul.f32 0.5, %v470
    %v472 = vsub.f32 1.5, %v471
    %v473 = vmul.f32 %v468, %v472
    %vm474 = vweird.f32 %v397
    %vm475 = vweird.f32 %v468
    %vm476 = vmor %vm474, %vm475
    %v477 = vsel %vm476, %v468, %v473
    %v478 = vmul.f32 %v382, %v407
    %v479 = vmul.f32 %v383, %v417
    %v480 = vmul.f32 %v384, %v427
    %v481 = vmul.f32 %v385, %v437
    %v482 = vmul.f32 %v386, %v447
    %v483 = vmul.f32 %v387, %v457
    %v484 = vmul.f32 %v388, %v467
    %v485 = vmul.f32 %v389, %v477
    %v487 = vperm.slane %v274, 0
    %v489 = vmul.f32 %v478, %v487
    %v490 = vmul.f32 %v479, %v487
    %v491 = vmul.f32 %v480, %v487
    %v492 = vmul.f32 %v481, %v487
    %v493 = vmul.f32 %v482, %v487
    %v494 = vmul.f32 %v483, %v487
    %v495 = vmul.f32 %v484, %v487
    %v496 = vmul.f32 %v485, %v487
    %v498 = vperm.slane %v275, 0
    %v500 = vadd.f32 %v489, %v498
    %v501 = vadd.f32 %v490, %v498
    %v502 = vadd.f32 %v491, %v498
    %v503 = vadd.f32 %v492, %v498
    %v504 = vadd.f32 %v493, %v498
    %v505 = vadd.f32 %v494, %v498
    %v506 = vadd.f32 %v495, %v498
    %v507 = vadd.f32 %v496, %v498
    %v508 = vmax.f32 %v500, 0.0
    %v509 = vmax.f32 %v501, 0.0
    %v510 = vmax.f32 %v502, 0.0
    %v511 = vmax.f32 %v503, 0.0
    %v512 = vmax.f32 %v504, 0.0
    %v513 = vmax.f32 %v505, 0.0
    %v514 = vmax.f32 %v506, 0.0
    %v515 = vmax.f32 %v507, 0.0
    %v516 = vld [vmem:[%s19] sm:$0xff]
    %v517 = vld [vmem:[%s19 + $0x8] sm:$0xff]
    %v518 = vld [vmem:[%s19 + $0x10] sm:$0xff]
    %v519 = vld [vmem:[%s19 + $0x18] sm:$0xff]
    %v520 = vld [vmem:[%s19 + $0x20] sm:$0xff]
    %v521 = vld [vmem:[%s19 + $0x28] sm:$0xff]
    %v522 = vld [vmem:[%s19 + $0x30] sm:$0xff]
    %v523 = vld [vmem:[%s19 + $0x38] sm:$0xff]
    %v524 = vld [vmem:[%s19 + $0x40] sm:$0xff]
    %v525 = vld [vmem:[%s19 + $0x48] sm:$0xff]
    %v526 = vld [vmem:[%s19 + $0x50] sm:$0xff]
    %v527 = vld [vmem:[%s19 + $0x58] sm:$0xff]
    %v528 = vld [vmem:[%s19 + $0x60] sm:$0xff]
    %v529 = vld [vmem:[%s19 + $0x68] sm:$0xff]
    %v530 = vld [vmem:[%s19 + $0x70] sm:$0xff]
    %v531 = vld [vmem:[%s19 + $0x78] sm:$0xff]
    %v532 = vld [vmem:[%s21] sm:$0x1]
    %v534 = vperm.slane %v532, 0
    %536 = vmatpush.msra.mxu0 %v531
    %537 = vmatpush.msra.mxu0 %v530
    %538 = vmatpush.msra.mxu0 %v529
    %539 = vmatpush.msra.mxu0 %v528
    %540 = vmatpush.msra.mxu0 %v527
    %541 = vmatpush.msra.mxu0 %v526
    %542 = vmatpush.msra.mxu0 %v525
    %543 = vmatpush.msra.mxu0 %v524
    %544 = vmatpush.msra.mxu0 %v523
    %545 = vmatpush.msra.mxu0 %v522
    %546 = vmatpush.msra.mxu0 %v521
    %547 = vmatpush.msra.mxu0 %v520
    %548 = vmatpush.msra.mxu0 %v519
    %549 = vmatpush.msra.mxu0 %v518
    %550 = vmatpush.msra.mxu0 %v517
    %551 = vmatpush.msra.mxu0 %v516
    %552 = vmatmul.f32.gmra.mxu0 %v508
    %v553 = vpop.f32.mrf.mxu0
    %v554 = vadd.f32 %v534, %v553
    %555 = vmatmul.f32.gmra.mxu0 %v509
    %v556 = vpop.f32.mrf.mxu0
    %v557 = vadd.f32 %v534, %v556
    %558 = vmatmul.f32.gmra.mxu0 %v510
    %v559 = vpop.f32.mrf.mxu0
    %v560 = vadd.f32 %v534, %v559
    %561 = vmatmul.f32.gmra.mxu0 %v511
    %v562 = vpop.f32.mrf.mxu0
    %v563 = vadd.f32 %v534, %v562
    %564 = vmatmul.f32.gmra.mxu0 %v512
    %v565 = vpop.f32.mrf.mxu0
    %v566 = vadd.f32 %v534, %v565
    %567 = vmatmul.f32.gmra.mxu0 %v513
    %v568 = vpop.f32.mrf.mxu0
    %v569 = vadd.f32 %v534, %v568
    %570 = vmatmul.f32.gmra.mxu0 %v514
    %v571 = vpop.f32.mrf.mxu0
    %v572 = vadd.f32 %v534, %v571
    %573 = vmatmul.f32.gmra.mxu0 %v515
    %v574 = vpop.f32.mrf.mxu0
    %v575 = vadd.f32 %v534, %v574
    %576 = vdwg.mxu0
    %v577 = vld [vmem:[%s23] sm:$0x1]
    %v578 = vld [vmem:[%s25] sm:$0x1]
    %579 = vmatpush.msra.mxu0 %v198
    %580 = vmatpush.msra.mxu0 %v197
    %581 = vmatpush.msra.mxu0 %v196
    %582 = vmatpush.msra.mxu0 %v195
    %583 = vmatpush.msra.mxu0 %v194
    %584 = vmatpush.msra.mxu0 %v193
    %585 = vmatpush.msra.mxu0 %v192
    %586 = vmatpush.msra.mxu0 %v191
    %587 = vmatpush.msra.mxu0 %v190
    %588 = vmatpush.msra.mxu0 %v189
    %589 = vmatpush.msra.mxu0 %v188
    %590 = vmatpush.msra.mxu0 %v187
    %591 = vmatpush.msra.mxu0 %v186
    %592 = vmatpush.msra.mxu0 %v185
    %593 = vmatpush.msra.mxu0 %v184
    %594 = vmatpush.msra.mxu0 %v183
    %595 = vmatmul.f32.gmra.mxu0 %v554
    %v596 = vpop.f32.mrf.mxu0
    %v597 = vadd.f32 0.0, %v596
    %598 = vmatmul.f32.gmra.mxu0 %v557
    %v599 = vpop.f32.mrf.mxu0
    %v600 = vadd.f32 0.0, %v599
    %601 = vmatmul.f32.gmra.mxu0 %v560
    %v602 = vpop.f32.mrf.mxu0
    %v603 = vadd.f32 0.0, %v602
    %604 = vmatmul.f32.gmra.mxu0 %v563
    %v605 = vpop.f32.mrf.mxu0
    %v606 = vadd.f32 0.0, %v605
    %607 = vmatmul.f32.gmra.mxu0 %v566
    %v608 = vpop.f32.mrf.mxu0
    %v609 = vadd.f32 0.0, %v608
    %610 = vmatmul.f32.gmra.mxu0 %v569
    %v611 = vpop.f32.mrf.mxu0
    %v612 = vadd.f32 0.0, %v611
    %613 = vmatmul.f32.gmra.mxu0 %v572
    %v614 = vpop.f32.mrf.mxu0
    %v615 = vadd.f32 0.0, %v614
    %616 = vmatmul.f32.gmra.mxu0 %v575
    %v617 = vpop.f32.mrf.mxu0
    %v618 = vadd.f32 0.0, %v617
    %619 = vdwg.mxu0
    %v620 = vmul.f32 %v554, %v554
    %v621 = vmul.f32 %v557, %v557
    %v622 = vmul.f32 %v560, %v560
    %v623 = vmul.f32 %v563, %v563
    %v624 = vmul.f32 %v566, %v566
    %v625 = vmul.f32 %v569, %v569
    %v626 = vmul.f32 %v572, %v572
    %v627 = vmul.f32 %v575, %v575
    %628 = vmatpush.msra.mxu0 %v198
    %629 = vmatpush.msra.mxu0 %v197
    %630 = vmatpush.msra.mxu0 %v196
    %631 = vmatpush.msra.mxu0 %v195
    %632 = vmatpush.msra.mxu0 %v194
    %633 = vmatpush.msra.mxu0 %v193
    %634 = vmatpush.msra.mxu0 %v192
    %635 = vmatpush.msra.mxu0 %v191
    %636 = vmatpush.msra.mxu0 %v190
    %637 = vmatpush.msra.mxu0 %v189
    %638 = vmatpush.msra.mxu0 %v188
    %639 = vmatpush.msra.mxu0 %v187
    %640 = vmatpush.msra.mxu0 %v186
    %641 = vmatpush.msra.mxu0 %v185
    %642 = vmatpush.msra.mxu0 %v184
    %643 = vmatpush.msra.mxu0 %v183
    %644 = vmatmul.f32.gmra.mxu0 %v620
    %v645 = vpop.f32.mrf.mxu0
    %v646 = vadd.f32 0.0, %v645
    %647 = vmatmul.f32.gmra.mxu0 %v621
    %v648 = vpop.f32.mrf.mxu0
    %v649 = vadd.f32 0.0, %v648
    %650 = vmatmul.f32.gmra.mxu0 %v622
    %v651 = vpop.f32.mrf.mxu0
    %v652 = vadd.f32 0.0, %v651
    %653 = vmatmul.f32.gmra.mxu0 %v623
    %v654 = vpop.f32.mrf.mxu0
    %v655 = vadd.f32 0.0, %v654
    %656 = vmatmul.f32.gmra.mxu0 %v624
    %v657 = vpop.f32.mrf.mxu0
    %v658 = vadd.f32 0.0, %v657
    %659 = vmatmul.f32.gmra.mxu0 %v625
    %v660 = vpop.f32.mrf.mxu0
    %v661 = vadd.f32 0.0, %v660
    %662 = vmatmul.f32.gmra.mxu0 %v626
    %v663 = vpop.f32.mrf.mxu0
    %v664 = vadd.f32 0.0, %v663
    %665 = vmatmul.f32.gmra.mxu0 %v627
    %v666 = vpop.f32.mrf.mxu0
    %v667 = vadd.f32 0.0, %v666
    %668 = vdwg.mxu0
    %v669 = vmul.f32 %v597, %v597
    %v670 = vmul.f32 %v600, %v600
    %v671 = vmul.f32 %v603, %v603
    %v672 = vmul.f32 %v606, %v606
    %v673 = vmul.f32 %v609, %v609
    %v674 = vmul.f32 %v612, %v612
    %v675 = vmul.f32 %v615, %v615
    %v676 = vmul.f32 %v618, %v618
    %v677 = vsub.f32 %v646, %v669
    %v678 = vsub.f32 %v649, %v670
    %v679 = vsub.f32 %v652, %v671
    %v680 = vsub.f32 %v655, %v672
    %v681 = vsub.f32 %v658, %v673
    %v682 = vsub.f32 %v661, %v674
    %v683 = vsub.f32 %v664, %v675
    %v684 = vsub.f32 %v667, %v676
    %v685 = vsub.f32 %v554, %v597
    %v686 = vsub.f32 %v557, %v600
    %v687 = vsub.f32 %v560, %v603
    %v688 = vsub.f32 %v563, %v606
    %v689 = vsub.f32 %v566, %v609
    %v690 = vsub.f32 %v569, %v612
    %v691 = vsub.f32 %v572, %v615
    %v692 = vsub.f32 %v575, %v618
    %v693 = vadd.f32 %v677, 1e-05
    %v694 = vadd.f32 %v678, 1e-05
    %v695 = vadd.f32 %v679, 1e-05
    %v696 = vadd.f32 %v680, 1e-05
    %v697 = vadd.f32 %v681, 1e-05
    %v698 = vadd.f32 %v682, 1e-05
    %v699 = vadd.f32 %v683, 1e-05
    %v700 = vadd.f32 %v684, 1e-05
    %v701 = vrsqrt.pop %v693
    %v702 = vmul.f32 %v701, %v693
    %v703 = vmul.f32 %v702, %v701
    %v704 = vmul.f32 0.5, %v703
    %v705 = vsub.f32 1.5, %v704
    %v706 = vmul.f32 %v701, %v705
    %vm707 = vweird.f32 %v693
    %vm708 = vweird.f32 %v701
    %vm709 = vmor %vm707, %vm708
    %v710 = vsel %vm709, %v701, %v706
    %v711 = vrsqrt.pop %v694
    %v712 = vmul.f32 %v711, %v694
    %v713 = vmul.f32 %v712, %v711
    %v714 = vmul.f32 0.5, %v713
    %v715 = vsub.f32 1.5, %v714
    %v716 = vmul.f32 %v711, %v715
    %vm717 = vweird.f32 %v694
    %vm718 = vweird.f32 %v711
    %vm719 = vmor %vm717, %vm718
    %v720 = vsel %vm719, %v711, %v716
    %v721 = vrsqrt.pop %v695
    %v722 = vmul.f32 %v721, %v695
    %v723 = vmul.f32 %v722, %v721
    %v724 = vmul.f32 0.5, %v723
    %v725 = vsub.f32 1.5, %v724
    %v726 = vmul.f32 %v721, %v725
    %vm727 = vweird.f32 %v695
    %vm728 = vweird.f32 %v721
    %vm729 = vmor %vm727, %vm728
    %v730 = vsel %vm729, %v721, %v726
    %v731 = vrsqrt.pop %v696
    %v732 = vmul.f32 %v731, %v696
    %v733 = vmul.f32 %v732, %v731
    %v734 = vmul.f32 0.5, %v733
    %v735 = vsub.f32 1.5, %v734
    %v736 = vmul.f32 %v731, %v735
    %vm737 = vweird.f32 %v696
    %vm738 = vweird.f32 %v731
    %vm739 = vmor %vm737, %vm738
    %v740 = vsel %vm739, %v731, %v736
    %v741 = vrsqrt.pop %v697
    %v742 = vmul.f32 %v741, %v697
    %v743 = vmul.f32 %v742, %v741
    %v744 = vmul.f32 0.5, %v743
    %v745 = vsub.f32 1.5, %v744
    %v746 = vmul.f32 %v741, %v745
    %vm747 = vweird.f32 %v697
    %vm748 = vweird.f32 %v741
    %vm749 = vmor %vm747, %vm748
    %v750 = vsel %vm749, %v741, %v746
    %v751 = vrsqrt.pop %v698
    %v752 = vmul.f32 %v751, %v698
    %v753 = vmul.f32 %v752, %v751
    %v754 = vmul.f32 0.5, %v753
    %v755 = vsub.f32 1.5, %v754
    %v756 = vmul.f32 %v751, %v755
    %vm757 = vweird.f32 %v698
    %vm758 = vweird.f32 %v751
    %vm759 = vmor %vm757, %vm758
    %v760 = vsel %vm759, %v751, %v756
    %v761 = vrsqrt.pop %v699
    %v762 = vmul.f32 %v761, %v699
    %v763 = vmul.f32 %v762, %v761
    %v764 = vmul.f32 0.5, %v763
    %v765 = vsub.f32 1.5, %v764
    %v766 = vmul.f32 %v761, %v765
    %vm767 = vweird.f32 %v699
    %vm768 = vweird.f32 %v761
    %vm769 = vmor %vm767, %vm768
    %v770 = vsel %vm769, %v761, %v766
    %v771 = vrsqrt.pop %v700
    %v772 = vmul.f32 %v771, %v700
    %v773 = vmul.f32 %v772, %v771
    %v774 = vmul.f32 0.5, %v773
    %v775 = vsub.f32 1.5, %v774
    %v776 = vmul.f32 %v771, %v775
    %vm777 = vweird.f32 %v700
    %vm778 = vweird.f32 %v771
    %vm779 = vmor %vm777, %vm778
    %v780 = vsel %vm779, %v771, %v776
    %v781 = vmul.f32 %v685, %v710
    %v782 = vmul.f32 %v686, %v720
    %v783 = vmul.f32 %v687, %v730
    %v784 = vmul.f32 %v688, %v740
    %v785 = vmul.f32 %v689, %v750
    %v786 = vmul.f32 %v690, %v760
    %v787 = vmul.f32 %v691, %v770
    %v788 = vmul.f32 %v692, %v780
    %v790 = vperm.slane %v577, 0
    %v792 = vmul.f32 %v781, %v790
    %v793 = vmul.f32 %v782, %v790
    %v794 = vmul.f32 %v783, %v790
    %v795 = vmul.f32 %v784, %v790
    %v796 = vmul.f32 %v785, %v790
    %v797 = vmul.f32 %v786, %v790
    %v798 = vmul.f32 %v787, %v790
    %v799 = vmul.f32 %v788, %v790
    %v801 = vperm.slane %v578, 0
    %v803 = vadd.f32 %v792, %v801
    %v804 = vadd.f32 %v793, %v801
    %v805 = vadd.f32 %v794, %v801
    %v806 = vadd.f32 %v795, %v801
    %v807 = vadd.f32 %v796, %v801
    %v808 = vadd.f32 %v797, %v801
    %v809 = vadd.f32 %v798, %v801
    %v810 = vadd.f32 %v799, %v801
    %v811 = vmax.f32 %v803, 0.0
    %v812 = vmax.f32 %v804, 0.0
    %v813 = vmax.f32 %v805, 0.0
    %v814 = vmax.f32 %v806, 0.0
    %v815 = vmax.f32 %v807, 0.0
    %v816 = vmax.f32 %v808, 0.0
    %v817 = vmax.f32 %v809, 0.0
    %v818 = vmax.f32 %v810, 0.0
    %v819 = vld [vmem:[%s27] sm:$0xff]
    %v820 = vld [vmem:[%s27 + $0x8] sm:$0xff]
    %v821 = vld [vmem:[%s27 + $0x10] sm:$0xff]
    %v822 = vld [vmem:[%s27 + $0x18] sm:$0xff]
    %v823 = vld [vmem:[%s27 + $0x20] sm:$0xff]
    %v824 = vld [vmem:[%s27 + $0x28] sm:$0xff]
    %v825 = vld [vmem:[%s27 + $0x30] sm:$0xff]
    %v826 = vld [vmem:[%s27 + $0x38] sm:$0xff]
    %v827 = vld [vmem:[%s27 + $0x40] sm:$0xff]
    %v828 = vld [vmem:[%s27 + $0x48] sm:$0xff]
    %v829 = vld [vmem:[%s27 + $0x50] sm:$0xff]
    %v830 = vld [vmem:[%s27 + $0x58] sm:$0xff]
    %v831 = vld [vmem:[%s27 + $0x60] sm:$0xff]
    %v832 = vld [vmem:[%s27 + $0x68] sm:$0xff]
    %v833 = vld [vmem:[%s27 + $0x70] sm:$0xff]
    %v834 = vld [vmem:[%s27 + $0x78] sm:$0xff]
    %v835 = vld [vmem:[%s29] sm:$0x1]
    %v837 = vperm.slane %v835, 0
    %839 = vmatpush.msra.mxu0 %v834
    %840 = vmatpush.msra.mxu0 %v833
    %841 = vmatpush.msra.mxu0 %v832
    %842 = vmatpush.msra.mxu0 %v831
    %843 = vmatpush.msra.mxu0 %v830
    %844 = vmatpush.msra.mxu0 %v829
    %845 = vmatpush.msra.mxu0 %v828
    %846 = vmatpush.msra.mxu0 %v827
    %847 = vmatpush.msra.mxu0 %v826
    %848 = vmatpush.msra.mxu0 %v825
    %849 = vmatpush.msra.mxu0 %v824
    %850 = vmatpush.msra.mxu0 %v823
    %851 = vmatpush.msra.mxu0 %v822
    %852 = vmatpush.msra.mxu0 %v821
    %853 = vmatpush.msra.mxu0 %v820
    %854 = vmatpush.msra.mxu0 %v819
    %855 = vmatmul.f32.gmra.mxu0 %v811
    %v856 = vpop.f32.mrf.mxu0
    %v857 = vadd.f32 %v837, %v856
    %858 = vmatmul.f32.gmra.mxu0 %v812
    %v859 = vpop.f32.mrf.mxu0
    %v860 = vadd.f32 %v837, %v859
    %861 = vmatmul.f32.gmra.mxu0 %v813
    %v862 = vpop.f32.mrf.mxu0
    %v863 = vadd.f32 %v837, %v862
    %864 = vmatmul.f32.gmra.mxu0 %v814
    %v865 = vpop.f32.mrf.mxu0
    %v866 = vadd.f32 %v837, %v865
    %867 = vmatmul.f32.gmra.mxu0 %v815
    %v868 = vpop.f32.mrf.mxu0
    %v869 = vadd.f32 %v837, %v868
    %870 = vmatmul.f32.gmra.mxu0 %v816
    %v871 = vpop.f32.mrf.mxu0
    %v872 = vadd.f32 %v837, %v871
    %873 = vmatmul.f32.gmra.mxu0 %v817
    %v874 = vpop.f32.mrf.mxu0
    %v875 = vadd.f32 %v837, %v874
    %876 = vmatmul.f32.gmra.mxu0 %v818
    %v877 = vpop.f32.mrf.mxu0
    %v878 = vadd.f32 %v837, %v877
    %879 = vdwg.mxu0
    %v880 = vld [vmem:[%s33] sm:$0x3f]
    %v881 = vld [vmem:[%s35] sm:$0x7]
    %v882 = vld [vmem:[%s37] sm:$0xf]
    %v883 = vld [vmem:[%s39] sm:$0xf]
    %v884 = vld [vmem:[%s41] sm:$0xff]
    %v885 = vld [vmem:[%s41 + $0x8] sm:$0xff]
    %v886 = vld [vmem:[%s41 + $0x10] sm:$0xff]
    %v887 = vld [vmem:[%s43] sm:$0xff]
    %v888 = vld [vmem:[%s43 + $0x8] sm:$0xff]
    %v889 = vld [vmem:[%s43 + $0x10] sm:$0xff]
    %v890 = vld [vmem:[%s43 + $0x18] sm:$0xff]
    %v891 = vld [vmem:[%s45] sm:$0xff]
    %v892 = vld [vmem:[%s45 + $0x8] sm:$0xf]
    %vm893 = vcmask 23552
    %v895 = vsel %vm893, %v166, 0
    %v898 = vsel %vm893, %v167, 0
    %v901 = vsel %vm893, %v168, 0
    %v904 = vsel %vm893, %v169, 0
    %v907 = vsel %vm893, %v170, 0
    %v910 = vsel %vm893, %v171, 0
    %v913 = vsel %vm893, %v172, 0
    %v916 = vsel %vm893, %v173, 0
    %vm918 = vcmask 1042432
    %v920 = vsel %vm918, %v881, 0
    %922 = vmatpush.msra.mxu0 0.0
    %923 = vmatpush.msra.mxu0 0.0
    %924 = vmatpush.msra.mxu0 0.0
    %925 = vmatpush.msra.mxu0 0.0
    %926 = vmatpush.msra.mxu0 0.0
    %927 = vmatpush.msra.mxu0 0.0
    %928 = vmatpush.msra.mxu0 0.0
    %929 = vmatpush.msra.mxu0 0.0
    %930 = vmatpush.msra.mxu0 0.0
    %931 = vmatpush.msra.mxu0 0.0
    %932 = vmatpush.msra.mxu0 0.0
    %933 = vmatpush.msra.mxu0 0.0
    %934 = vmatpush.msra.mxu0 0.0
    %935 = vmatpush.msra.mxu0 0.0
    %936 = vmatpush.msra.mxu0 0.0
    %937 = vmatpush.msra.mxu0 %v920
    %938 = vmatmul.f32.gmra.mxu0 %v895
    %v939 = vpop.f32.mrf.mxu0
    %v940 = vadd.f32 0.0, %v939
    %941 = vmatmul.f32.gmra.mxu0 %v898
    %v942 = vpop.f32.mrf.mxu0
    %v943 = vadd.f32 0.0, %v942
    %944 = vmatmul.f32.gmra.mxu0 %v901
    %v945 = vpop.f32.mrf.mxu0
    %v946 = vadd.f32 0.0, %v945
    %947 = vmatmul.f32.gmra.mxu0 %v904
    %v948 = vpop.f32.mrf.mxu0
    %v949 = vadd.f32 0.0, %v948
    %950 = vmatmul.f32.gmra.mxu0 %v907
    %v951 = vpop.f32.mrf.mxu0
    %v952 = vadd.f32 0.0, %v951
    %953 = vmatmul.f32.gmra.mxu0 %v910
    %v954 = vpop.f32.mrf.mxu0
    %v955 = vadd.f32 0.0, %v954
    %956 = vmatmul.f32.gmra.mxu0 %v913
    %v957 = vpop.f32.mrf.mxu0
    %v958 = vadd.f32 0.0, %v957
    %959 = vmatmul.f32.gmra.mxu0 %v916
    %v960 = vpop.f32.mrf.mxu0
    %v961 = vadd.f32 0.0, %v960
    %962 = vdwg.mxu0
    %vm963 = vcmask 64512
    %v965 = vsel %vm963, %v175, 0
    %v968 = vsel %vm963, %v176, 0
    %v971 = vsel %vm963, %v177, 0
    %v974 = vsel %vm963, %v178, 0
    %v977 = vsel %vm963, %v179, 0
    %v980 = vsel %vm963, %v180, 0
    %v983 = vsel %vm963, %v181, 0
    %v986 = vsel %vm963, %v182, 0
    %988 = vmatpush.msra.mxu0 0.0
    %989 = vmatpush.msra.mxu0 0.0
    %990 = vmatpush.msra.mxu0 0.0
    %991 = vmatpush.msra.mxu0 0.0
    %992 = vmatpush.msra.mxu0 0.0
    %993 = vmatpush.msra.mxu0 0.0
    %994 = vmatpush.msra.mxu0 0.0
    %995 = vmatpush.msra.mxu0 0.0
    %996 = vmatpush.msra.mxu0 0.0
    %997 = vmatpush.msra.mxu0 0.0
    %998 = vmatpush.msra.mxu0 0.0
    %999 = vmatpush.msra.mxu0 0.0
    %1000 = vmatpush.msra.mxu0 0.0
    %1001 = vmatpush.msra.mxu0 0.0
    %1002 = vmatpush.msra.mxu0 0.0
    %1003 = vmatpush.msra.mxu0 %v157
    %1004 = vmatmul.f32.gmra.mxu0 %v965
    %v1005 = vpop.f32.mrf.mxu0
    %v1006 = vadd.f32 0.0, %v1005
    %1007 = vmatmul.f32.gmra.mxu0 %v968
    %v1008 = vpop.f32.mrf.mxu0
    %v1009 = vadd.f32 0.0, %v1008
    %1010 = vmatmul.f32.gmra.mxu0 %v971
    %v1011 = vpop.f32.mrf.mxu0
    %v1012 = vadd.f32 0.0, %v1011
    %1013 = vmatmul.f32.gmra.mxu0 %v974
    %v1014 = vpop.f32.mrf.mxu0
    %v1015 = vadd.f32 0.0, %v1014
    %1016 = vmatmul.f32.gmra.mxu0 %v977
    %v1017 = vpop.f32.mrf.mxu0
    %v1018 = vadd.f32 0.0, %v1017
    %1019 = vmatmul.f32.gmra.mxu0 %v980
    %v1020 = vpop.f32.mrf.mxu0
    %v1021 = vadd.f32 0.0, %v1020
    %1022 = vmatmul.f32.gmra.mxu0 %v983
    %v1023 = vpop.f32.mrf.mxu0
    %v1024 = vadd.f32 0.0, %v1023
    %1025 = vmatmul.f32.gmra.mxu0 %v986
    %v1026 = vpop.f32.mrf.mxu0
    %v1027 = vadd.f32 0.0, %v1026
    %1028 = vdwg.mxu0
    %vm1029 = vcmask 48128
    %v1031 = vsel %vm1029, %v1006, 0
    %v1034 = vsel %vm1029, %v1009, 0
    %v1037 = vsel %vm1029, %v1012, 0
    %v1040 = vsel %vm1029, %v1015, 0
    %v1043 = vsel %vm1029, %v1018, 0
    %v1046 = vsel %vm1029, %v1021, 0
    %v1049 = vsel %vm1029, %v1024, 0
    %v1052 = vsel %vm1029, %v1027, 0
    %vm1054 = vcmask 1045504
    %v1056 = vsel %vm1054, %v880, 0
    %1058 = vmatpush.msra.mxu0 0.0
    %1059 = vmatpush.msra.mxu0 0.0
    %1060 = vmatpush.msra.mxu0 0.0
    %1061 = vmatpush.msra.mxu0 0.0
    %1062 = vmatpush.msra.mxu0 0.0
    %1063 = vmatpush.msra.mxu0 0.0
    %1064 = vmatpush.msra.mxu0 0.0
    %1065 = vmatpush.msra.mxu0 0.0
    %1066 = vmatpush.msra.mxu0 0.0
    %1067 = vmatpush.msra.mxu0 0.0
    %1068 = vmatpush.msra.mxu0 0.0
    %1069 = vmatpush.msra.mxu0 0.0
    %1070 = vmatpush.msra.mxu0 0.0
    %1071 = vmatpush.msra.mxu0 0.0
    %1072 = vmatpush.msra.mxu0 0.0
    %1073 = vmatpush.msra.mxu0 %v1056
    %1074 = vmatmul.f32.gmra.mxu0 %v1031
    %v1075 = vpop.f32.mrf.mxu0
    %v1076 = vadd.f32 0.0, %v1075
    %1077 = vmatmul.f32.gmra.mxu0 %v1034
    %v1078 = vpop.f32.mrf.mxu0
    %v1079 = vadd.f32 0.0, %v1078
    %1080 = vmatmul.f32.gmra.mxu0 %v1037
    %v1081 = vpop.f32.mrf.mxu0
    %v1082 = vadd.f32 0.0, %v1081
    %1083 = vmatmul.f32.gmra.mxu0 %v1040
    %v1084 = vpop.f32.mrf.mxu0
    %v1085 = vadd.f32 0.0, %v1084
    %1086 = vmatmul.f32.gmra.mxu0 %v1043
    %v1087 = vpop.f32.mrf.mxu0
    %v1088 = vadd.f32 0.0, %v1087
    %1089 = vmatmul.f32.gmra.mxu0 %v1046
    %v1090 = vpop.f32.mrf.mxu0
    %v1091 = vadd.f32 0.0, %v1090
    %1092 = vmatmul.f32.gmra.mxu0 %v1049
    %v1093 = vpop.f32.mrf.mxu0
    %v1094 = vadd.f32 0.0, %v1093
    %1095 = vmatmul.f32.gmra.mxu0 %v1052
    %v1096 = vpop.f32.mrf.mxu0
    %v1097 = vadd.f32 0.0, %v1096
    %1098 = vdwg.mxu0
    %v1099 = vmul.f32 %v857, %v1076
    %v1100 = vmul.f32 %v860, %v1079
    %v1101 = vmul.f32 %v863, %v1082
    %v1102 = vmul.f32 %v866, %v1085
    %v1103 = vmul.f32 %v869, %v1088
    %v1104 = vmul.f32 %v872, %v1091
    %v1105 = vmul.f32 %v875, %v1094
    %v1106 = vmul.f32 %v878, %v1097
    %vm1107 = vcmask 195584
    %v1109 = vsel %vm1107, %v1099, 0
    %v1112 = vsel %vm1107, %v1100, 0
    %v1115 = vsel %vm1107, %v1101, 0
    %v1118 = vsel %vm1107, %v1102, 0
    %v1121 = vsel %vm1107, %v1103, 0
    %v1124 = vsel %vm1107, %v1104, 0
    %v1127 = vsel %vm1107, %v1105, 0
    %v1130 = vsel %vm1107, %v1106, 0
    %1132 = vmatpush.msra.mxu0 0.0
    %1133 = vmatpush.msra.mxu0 0.0
    %1134 = vmatpush.msra.mxu0 0.0
    %1135 = vmatpush.msra.mxu0 0.0
    %1136 = vmatpush.msra.mxu0 0.0
    %1137 = vmatpush.msra.mxu0 0.0
    %1138 = vmatpush.msra.mxu0 0.0
    %1139 = vmatpush.msra.mxu0 0.0
    %1140 = vmatpush.msra.mxu0 0.0
    %1141 = vmatpush.msra.mxu0 0.0
    %1142 = vmatpush.msra.mxu0 0.0
    %1143 = vmatpush.msra.mxu0 0.0
    %1144 = vmatpush.msra.mxu0 0.0
    %1145 = vmatpush.msra.mxu0 %v886
    %1146 = vmatpush.msra.mxu0 %v885
    %1147 = vmatpush.msra.mxu0 %v884
    %1148 = vmatmul.f32.gmra.mxu0 %v1109
    %v1149 = vpop.f32.mrf.mxu0
    %v1150 = vadd.f32 0.0, %v1149
    %1151 = vmatmul.f32.gmra.mxu0 %v1112
    %v1152 = vpop.f32.mrf.mxu0
    %v1153 = vadd.f32 0.0, %v1152
    %1154 = vmatmul.f32.gmra.mxu0 %v1115
    %v1155 = vpop.f32.mrf.mxu0
    %v1156 = vadd.f32 0.0, %v1155
    %1157 = vmatmul.f32.gmra.mxu0 %v1118
    %v1158 = vpop.f32.mrf.mxu0
    %v1159 = vadd.f32 0.0, %v1158
    %1160 = vmatmul.f32.gmra.mxu0 %v1121
    %v1161 = vpop.f32.mrf.mxu0
    %v1162 = vadd.f32 0.0, %v1161
    %1163 = vmatmul.f32.gmra.mxu0 %v1124
    %v1164 = vpop.f32.mrf.mxu0
    %v1165 = vadd.f32 0.0, %v1164
    %1166 = vmatmul.f32.gmra.mxu0 %v1127
    %v1167 = vpop.f32.mrf.mxu0
    %v1168 = vadd.f32 0.0, %v1167
    %1169 = vmatmul.f32.gmra.mxu0 %v1130
    %v1170 = vpop.f32.mrf.mxu0
    %v1171 = vadd.f32 0.0, %v1170
    %1172 = vdwg.mxu0
    %1181 = vrot.lane.b32.xlu0 %v1076, 24
    %v1182 = vpop.permute.xlu0 %1181
    %1183 = vrot.lane.b32.xlu0 %v1079, 24
    %v1184 = vpop.permute.xlu0 %1183
    %1185 = vrot.lane.b32.xlu0 %v1082, 24
    %v1186 = vpop.permute.xlu0 %1185
    %1187 = vrot.lane.b32.xlu0 %v1085, 24
    %v1188 = vpop.permute.xlu0 %1187
    %1189 = vrot.lane.b32.xlu0 %v1088, 24
    %v1190 = vpop.permute.xlu0 %1189
    %1191 = vrot.lane.b32.xlu0 %v1091, 24
    %v1192 = vpop.permute.xlu0 %1191
    %1193 = vrot.lane.b32.xlu0 %v1094, 24
    %v1194 = vpop.permute.xlu0 %1193
    %1195 = vrot.lane.b32.xlu0 %v1097, 24
    %v1196 = vpop.permute.xlu0 %1195
    %v1205 = vmul.f32 %v857, %v1182
    %v1206 = vmul.f32 %v860, %v1184
    %v1207 = vmul.f32 %v863, %v1186
    %v1208 = vmul.f32 %v866, %v1188
    %v1209 = vmul.f32 %v869, %v1190
    %v1210 = vmul.f32 %v872, %v1192
    %v1211 = vmul.f32 %v875, %v1194
    %v1212 = vmul.f32 %v878, %v1196
    %1221 = vrot.lane.b32.xlu0 %v1205, 104
    %v1222 = vpop.permute.xlu0 %1221
    %1223 = vrot.lane.b32.xlu0 %v1206, 104
    %v1224 = vpop.permute.xlu0 %1223
    %1225 = vrot.lane.b32.xlu0 %v1207, 104
    %v1226 = vpop.permute.xlu0 %1225
    %1227 = vrot.lane.b32.xlu0 %v1208, 104
    %v1228 = vpop.permute.xlu0 %1227
    %1229 = vrot.lane.b32.xlu0 %v1209, 104
    %v1230 = vpop.permute.xlu0 %1229
    %1231 = vrot.lane.b32.xlu0 %v1210, 104
    %v1232 = vpop.permute.xlu0 %1231
    %1233 = vrot.lane.b32.xlu0 %v1211, 104
    %v1234 = vpop.permute.xlu0 %1233
    %1235 = vrot.lane.b32.xlu0 %v1212, 104
    %v1236 = vpop.permute.xlu0 %1235
    %v1237 = vsel %vm1107, %v1222, 0
    %v1239 = vsel %vm1107, %v1224, 0
    %v1241 = vsel %vm1107, %v1226, 0
    %v1243 = vsel %vm1107, %v1228, 0
    %v1245 = vsel %vm1107, %v1230, 0
    %v1247 = vsel %vm1107, %v1232, 0
    %v1249 = vsel %vm1107, %v1234, 0
    %v1251 = vsel %vm1107, %v1236, 0
    %1253 = vmatpush.msra.mxu0 0.0
    %1254 = vmatpush.msra.mxu0 0.0
    %1255 = vmatpush.msra.mxu0 0.0
    %1256 = vmatpush.msra.mxu0 0.0
    %1257 = vmatpush.msra.mxu0 0.0
    %1258 = vmatpush.msra.mxu0 0.0
    %1259 = vmatpush.msra.mxu0 0.0
    %1260 = vmatpush.msra.mxu0 0.0
    %1261 = vmatpush.msra.mxu0 0.0
    %1262 = vmatpush.msra.mxu0 0.0
    %1263 = vmatpush.msra.mxu0 0.0
    %1264 = vmatpush.msra.mxu0 0.0
    %1265 = vmatpush.msra.mxu0 0.0
    %1266 = vmatpush.msra.mxu0 %v886
    %1267 = vmatpush.msra.mxu0 %v885
    %1268 = vmatpush.msra.mxu0 %v884
    %1269 = vmatmul.f32.gmra.mxu0 %v1237
    %v1270 = vpop.f32.mrf.mxu0
    %v1271 = vadd.f32 0.0, %v1270
    %1272 = vmatmul.f32.gmra.mxu0 %v1239
    %v1273 = vpop.f32.mrf.mxu0
    %v1274 = vadd.f32 0.0, %v1273
    %1275 = vmatmul.f32.gmra.mxu0 %v1241
    %v1276 = vpop.f32.mrf.mxu0
    %v1277 = vadd.f32 0.0, %v1276
    %1278 = vmatmul.f32.gmra.mxu0 %v1243
    %v1279 = vpop.f32.mrf.mxu0
    %v1280 = vadd.f32 0.0, %v1279
    %1281 = vmatmul.f32.gmra.mxu0 %v1245
    %v1282 = vpop.f32.mrf.mxu0
    %v1283 = vadd.f32 0.0, %v1282
    %1284 = vmatmul.f32.gmra.mxu0 %v1247
    %v1285 = vpop.f32.mrf.mxu0
    %v1286 = vadd.f32 0.0, %v1285
    %1287 = vmatmul.f32.gmra.mxu0 %v1249
    %v1288 = vpop.f32.mrf.mxu0
    %v1289 = vadd.f32 0.0, %v1288
    %1290 = vmatmul.f32.gmra.mxu0 %v1251
    %v1291 = vpop.f32.mrf.mxu0
    %v1292 = vadd.f32 0.0, %v1291
    %1293 = vdwg.mxu0
    %vm1294 = vcmask 523264
    %v1296 = vsel %vm1294, %v174, 0
    %1298 = vmatpush.msra.mxu0 0.0
    %1299 = vmatpush.msra.mxu0 0.0
    %1300 = vmatpush.msra.mxu0 0.0
    %1301 = vmatpush.msra.mxu0 0.0
    %1302 = vmatpush.msra.mxu0 0.0
    %1303 = vmatpush.msra.mxu0 0.0
    %1304 = vmatpush.msra.mxu0 0.0
    %1305 = vmatpush.msra.mxu0 0.0
    %1306 = vmatpush.msra.mxu0 %v1171
    %1307 = vmatpush.msra.mxu0 %v1168
    %1308 = vmatpush.msra.mxu0 %v1165
    %1309 = vmatpush.msra.mxu0 %v1162
    %1310 = vmatpush.msra.mxu0 %v1159
    %1311 = vmatpush.msra.mxu0 %v1156
    %1312 = vmatpush.msra.mxu0 %v1153
    %1313 = vmatpush.msra.mxu0 %v1150
    %1314 = vmatmul.f32.gmra.mxu0 %v1296
    %v1315 = vpop.f32.mrf.mxu0
    %v1316 = vadd.f32 0.0, %v1315
    %1317 = vdwg.mxu0
    %v1318 = vmul.f32 %v1316, 0.2820948
    %v1319 = vld [vmem:[%s47] sm:$0x3f]
    %v1321 = vsel %vm1029, %v157, 0
    %v1324 = vsel %vm1054, %v1319, 0
    %1326 = vmatpush.msra.mxu0 0.0
    %1327 = vmatpush.msra.mxu0 0.0
    %1328 = vmatpush.msra.mxu0 0.0
    %1329 = vmatpush.msra.mxu0 0.0
    %1330 = vmatpush.msra.mxu0 0.0
    %1331 = vmatpush.msra.mxu0 0.0
    %1332 = vmatpush.msra.mxu0 0.0
    %1333 = vmatpush.msra.mxu0 0.0
    %1334 = vmatpush.msra.mxu0 0.0
    %1335 = vmatpush.msra.mxu0 0.0
    %1336 = vmatpush.msra.mxu0 0.0
    %1337 = vmatpush.msra.mxu0 0.0
    %1338 = vmatpush.msra.mxu0 0.0
    %1339 = vmatpush.msra.mxu0 0.0
    %1340 = vmatpush.msra.mxu0 0.0
    %1341 = vmatpush.msra.mxu0 %v1324
    %1342 = vmatmul.f32.gmra.mxu0 %v1321
    %v1343 = vpop.f32.mrf.mxu0
    %v1344 = vadd.f32 0.0, %v1343
    %1345 = vdwg.mxu0
    %v1346 = vadd.f32 %v1318, %v1344
    %vm1347 = vcmask 31744
    %v1349 = vsel %vm1347, %v1271, 0
    %v1352 = vsel %vm1347, %v1274, 0
    %v1355 = vsel %vm1347, %v1277, 0
    %v1358 = vsel %vm1347, %v1280, 0
    %v1361 = vsel %vm1347, %v1283, 0
    %v1364 = vsel %vm1347, %v1286, 0
    %v1367 = vsel %vm1347, %v1289, 0
    %v1370 = vsel %vm1347, %v1292, 0
    %vm1372 = vcmask 1043456
    %v1374 = vsel %vm1372, %v883, 0
    %1376 = vmatpush.msra.mxu0 0.0
    %1377 = vmatpush.msra.mxu0 0.0
    %1378 = vmatpush.msra.mxu0 0.0
    %1379 = vmatpush.msra.mxu0 0.0
    %1380 = vmatpush.msra.mxu0 0.0
    %1381 = vmatpush.msra.mxu0 0.0
    %1382 = vmatpush.msra.mxu0 0.0
    %1383 = vmatpush.msra.mxu0 0.0
    %1384 = vmatpush.msra.mxu0 0.0
    %1385 = vmatpush.msra.mxu0 0.0
    %1386 = vmatpush.msra.mxu0 0.0
    %1387 = vmatpush.msra.mxu0 0.0
    %1388 = vmatpush.msra.mxu0 0.0
    %1389 = vmatpush.msra.mxu0 0.0
    %1390 = vmatpush.msra.mxu0 0.0
    %1391 = vmatpush.msra.mxu0 %v1374
    %1392 = vmatmul.f32.gmra.mxu0 %v1349
    %v1393 = vpop.f32.mrf.mxu0
    %v1394 = vadd.f32 0.0, %v1393
    %1395 = vmatmul.f32.gmra.mxu0 %v1352
    %v1396 = vpop.f32.mrf.mxu0
    %v1397 = vadd.f32 0.0, %v1396
    %1398 = vmatmul.f32.gmra.mxu0 %v1355
    %v1399 = vpop.f32.mrf.mxu0
    %v1400 = vadd.f32 0.0, %v1399
    %1401 = vmatmul.f32.gmra.mxu0 %v1358
    %v1402 = vpop.f32.mrf.mxu0
    %v1403 = vadd.f32 0.0, %v1402
    %1404 = vmatmul.f32.gmra.mxu0 %v1361
    %v1405 = vpop.f32.mrf.mxu0
    %v1406 = vadd.f32 0.0, %v1405
    %1407 = vmatmul.f32.gmra.mxu0 %v1364
    %v1408 = vpop.f32.mrf.mxu0
    %v1409 = vadd.f32 0.0, %v1408
    %1410 = vmatmul.f32.gmra.mxu0 %v1367
    %v1411 = vpop.f32.mrf.mxu0
    %v1412 = vadd.f32 0.0, %v1411
    %1413 = vmatmul.f32.gmra.mxu0 %v1370
    %v1414 = vpop.f32.mrf.mxu0
    %v1415 = vadd.f32 0.0, %v1414
    %1416 = vdwg.mxu0
    %v1417 = vmul.f32 %v1394, %v940
    %v1418 = vmul.f32 %v1397, %v943
    %v1419 = vmul.f32 %v1400, %v946
    %v1420 = vmul.f32 %v1403, %v949
    %v1421 = vmul.f32 %v1406, %v952
    %v1422 = vmul.f32 %v1409, %v955
    %v1423 = vmul.f32 %v1412, %v958
    %v1424 = vmul.f32 %v1415, %v961
    %1425 = vmatpush.msra.mxu0 0.0
    %1426 = vmatpush.msra.mxu0 0.0
    %1427 = vmatpush.msra.mxu0 0.0
    %1428 = vmatpush.msra.mxu0 0.0
    %1429 = vmatpush.msra.mxu0 0.0
    %1430 = vmatpush.msra.mxu0 0.0
    %1431 = vmatpush.msra.mxu0 0.0
    %1432 = vmatpush.msra.mxu0 0.0
    %1433 = vmatpush.msra.mxu0 %v1424
    %1434 = vmatpush.msra.mxu0 %v1423
    %1435 = vmatpush.msra.mxu0 %v1422
    %1436 = vmatpush.msra.mxu0 %v1421
    %1437 = vmatpush.msra.mxu0 %v1420
    %1438 = vmatpush.msra.mxu0 %v1419
    %1439 = vmatpush.msra.mxu0 %v1418
    %1440 = vmatpush.msra.mxu0 %v1417
    %1441 = vmatmul.f32.gmra.mxu0 %v1296
    %v1442 = vpop.f32.mrf.mxu0
    %v1443 = vadd.f32 0.0, %v1442
    %1444 = vdwg.mxu0
    %v1445 = vand.u32 2147483647, %v1346
    %v1446 = vmax.f32 %v1445, 1e-12
    %v1447 = vrcp.pop %v1446
    %v1448 = vmul.f32 %v1446, %v1447
    %v1449 = vsub.f32 1.0, %v1448
    %v1450 = vmul.f32 %v1447, %v1449
    %v1451 = vadd.f32 %v1447, %v1450
    %vm1452 = vweird.f32 %v1446
    %vm1453 = vweird.f32 %v1447
    %vm1454 = vmor %vm1452, %vm1453
    %v1455 = vsel %vm1454, %v1447, %v1451
    %v1456 = vand.u32 2147483647, %v1446
    %vm1457 = vcmp.eq.f32.partialorder %v1456, 8.507059e+37
    %v1458 = vand.u32 %v1446, 2147483648
    %v1459 = vor.u32 1.1754944e-38, %v1458
    %v1460 = vsel %vm1457, %v1459, %v1455
    %v1461 = vmul.f32 %v1346, %v1460
    %v1462 = vld [vmem:[%s51] sm:$0x1]
    %v1463 = vld [vmem:[%s53] sm:$0x1]
    %v1464 = vsel %vm1347, %v1446, 0.0
    %1465 = vadd.xlane.f32.xlu0 %v1464
    %v1466 = vpop.xlane.xlu0 %1465
    %v1467 = vrcp.pop 4.0
    %v1468 = vmul.f32 4.0, %v1467
    %v1469 = vsub.f32 1.0, %v1468
    %v1470 = vmul.f32 %v1467, %v1469
    %v1471 = vadd.f32 %v1467, %v1470
    %vm1472 = vweird.f32 %v1467
    %v1473 = vsel %vm1472, %v1467, %v1471
    %v1474 = vmul.f32 %v1466, %v1473
    %v1475 = vsub.f32 %v1446, %v1474
    %v1476 = vmul.f32 %v1475, %v1475
    %v1477 = vsel %vm1347, %v1476, 0.0
    %1478 = vadd.xlane.f32.xlu0 %v1477
    %v1479 = vpop.xlane.xlu0 %1478
    %v1480 = vmul.f32 %v1479, %v1473
    %v1481 = vadd.f32 %v1480, 1e-05
    %v1482 = vrsqrt.pop %v1481
    %v1483 = vmul.f32 %v1482, %v1481
    %v1484 = vmul.f32 %v1483, %v1482
    %v1485 = vmul.f32 0.5, %v1484
    %v1486 = vsub.f32 1.5, %v1485
    %v1487 = vmul.f32 %v1482, %v1486
    %vm1488 = vweird.f32 %v1481
    %vm1489 = vweird.f32 %v1482
    %vm1490 = vmor %vm1488, %vm1489
    %v1491 = vsel %vm1490, %v1482, %v1487
    %v1492 = vmul.f32 %v1475, %v1491
    %v1494 = vperm.slane %v1462, 0
    %v1496 = vmul.f32 %v1492, %v1494
    %v1498 = vperm.slane %v1463, 0
    %v1500 = vadd.f32 %v1496, %v1498
    %v1501 = vmax.f32 %v1500, 0.0
    %v1502 = vld [vmem:[%s55] sm:$0xf]
    %v1503 = vld [vmem:[%s57] sm:$0x1]
    %v1505 = vperm.slane %v1503, 0
    %v1508 = vsel %vm1347, %v1501, 0
    %v1511 = vsel %vm1372, %v1502, 0
    %1513 = vmatpush.msra.mxu0 0.0
    %1514 = vmatpush.msra.mxu0 0.0
    %1515 = vmatpush.msra.mxu0 0.0
    %1516 = vmatpush.msra.mxu0 0.0
    %1517 = vmatpush.msra.mxu0 0.0
    %1518 = vmatpush.msra.mxu0 0.0
    %1519 = vmatpush.msra.mxu0 0.0
    %1520 = vmatpush.msra.mxu0 0.0
    %1521 = vmatpush.msra.mxu0 0.0
    %1522 = vmatpush.msra.mxu0 0.0
    %1523 = vmatpush.msra.mxu0 0.0
    %1524 = vmatpush.msra.mxu0 0.0
    %1525 = vmatpush.msra.mxu0 0.0
    %1526 = vmatpush.msra.mxu0 0.0
    %1527 = vmatpush.msra.mxu0 0.0
    %1528 = vmatpush.msra.mxu0 %v1511
    %1529 = vmatmul.f32.gmra.mxu0 %v1508
    %v1530 = vpop.f32.mrf.mxu0
    %v1531 = vadd.f32 %v1505, %v1530
    %1532 = vdwg.mxu0
    %v1533 = vmul.f32 %v1531, %v1461
    %v1534 = vmul.f32 %v1443, %v1443
    %vm1535 = vcmask 97280
    %v1537 = vsel %vm1535, %v1534, 0
    %v1540 = vsel %vm1372, %v892, 0
    %1542 = vmatpush.msra.mxu0 0.0
    %1543 = vmatpush.msra.mxu0 0.0
    %1544 = vmatpush.msra.mxu0 0.0
    %1545 = vmatpush.msra.mxu0 0.0
    %1546 = vmatpush.msra.mxu0 0.0
    %1547 = vmatpush.msra.mxu0 0.0
    %1548 = vmatpush.msra.mxu0 0.0
    %1549 = vmatpush.msra.mxu0 0.0
    %1550 = vmatpush.msra.mxu0 0.0
    %1551 = vmatpush.msra.mxu0 0.0
    %1552 = vmatpush.msra.mxu0 0.0
    %1553 = vmatpush.msra.mxu0 0.0
    %1554 = vmatpush.msra.mxu0 0.0
    %1555 = vmatpush.msra.mxu0 0.0
    %1556 = vmatpush.msra.mxu0 %v1540
    %1557 = vmatpush.msra.mxu0 %v891
    %1558 = vmatmul.f32.gmra.mxu0 %v1537
    %v1559 = vpop.f32.mrf.mxu0
    %v1560 = vadd.f32 0.0, %v1559
    %1561 = vdwg.mxu0
    %v1562 = vrsqrt.pop %v1560
    %v1563 = vmul.f32 %v1562, %v1560
    %v1564 = vmul.f32 %v1563, %v1562
    %v1565 = vmul.f32 0.5, %v1564
    %v1566 = vsub.f32 1.5, %v1565
    %v1567 = vmul.f32 %v1562, %v1566
    %v1568 = vmul.f32 %v1560, %v1567
    %vm1569 = vcmp.eq.f32.partialorder %v1560, inf
    %v1570 = vsel %vm1569, %v1560, %v1568
    %vm1571 = vcmp.eq.f32.partialorder %v1560, 0.0
    %v1572 = vand.u32 %v1560, 2147483648
    %v1573 = vsel %vm1571, %v1572, %v1570
    %v1574 = vmax.f32 %v1573, 1e-12
    %v1576 = vsel %vm1347, %v1574, 0
    %1578 = vmatpush.msra.mxu0 0.0
    %1579 = vmatpush.msra.mxu0 0.0
    %1580 = vmatpush.msra.mxu0 0.0
    %1581 = vmatpush.msra.mxu0 0.0
    %1582 = vmatpush.msra.mxu0 0.0
    %1583 = vmatpush.msra.mxu0 0.0
    %1584 = vmatpush.msra.mxu0 0.0
    %1585 = vmatpush.msra.mxu0 0.0
    %1586 = vmatpush.msra.mxu0 0.0
    %1587 = vmatpush.msra.mxu0 0.0
    %1588 = vmatpush.msra.mxu0 0.0
    %1589 = vmatpush.msra.mxu0 0.0
    %1590 = vmatpush.msra.mxu0 0.0
    %1591 = vmatpush.msra.mxu0 0.0
    %1592 = vmatpush.msra.mxu0 0.0
    %1593 = vmatpush.msra.mxu0 %v1374
    %1594 = vmatmul.f32.gmra.mxu0 %v1576
    %v1595 = vpop.f32.mrf.mxu0
    %v1596 = vadd.f32 0.0, %v1595
    %1597 = vdwg.mxu0
    %v1598 = vrcp.pop %v1596
    %v1599 = vmul.f32 %v1596, %v1598
    %v1600 = vsub.f32 1.0, %v1599
    %v1601 = vmul.f32 %v1598, %v1600
    %v1602 = vadd.f32 %v1598, %v1601
    %vm1603 = vweird.f32 %v1596
    %vm1604 = vweird.f32 %v1598
    %vm1605 = vmor %vm1603, %vm1604
    %v1606 = vsel %vm1605, %v1598, %v1602
    %v1607 = vand.u32 2147483647, %v1596
    %vm1608 = vcmp.eq.f32.partialorder %v1607, 8.507059e+37
    %v1609 = vand.u32 %v1596, 2147483648
    %v1610 = vor.u32 1.1754944e-38, %v1609
    %v1611 = vsel %vm1608, %v1610, %v1606
    %v1612 = vmul.f32 %v1443, %v1611
    %v1613 = vld [vmem:[%s59] sm:$0x1]
    %v1614 = vld [vmem:[%s61] sm:$0x1]
    %v1615 = vsel %vm1347, %v1574, 0.0
    %1616 = vadd.xlane.f32.xlu0 %v1615
    %v1617 = vpop.xlane.xlu0 %1616
    %v1618 = vmul.f32 %v1617, %v1473
    %v1619 = vsub.f32 %v1574, %v1618
    %v1620 = vmul.f32 %v1619, %v1619
    %v1621 = vsel %vm1347, %v1620, 0.0
    %1622 = vadd.xlane.f32.xlu0 %v1621
    %v1623 = vpop.xlane.xlu0 %1622
    %v1624 = vmul.f32 %v1623, %v1473
    %v1625 = vadd.f32 %v1624, 1e-05
    %v1626 = vrsqrt.pop %v1625
    %v1627 = vmul.f32 %v1626, %v1625
    %v1628 = vmul.f32 %v1627, %v1626
    %v1629 = vmul.f32 0.5, %v1628
    %v1630 = vsub.f32 1.5, %v1629
    %v1631 = vmul.f32 %v1626, %v1630
    %vm1632 = vweird.f32 %v1625
    %vm1633 = vweird.f32 %v1626
    %vm1634 = vmor %vm1632, %vm1633
    %v1635 = vsel %vm1634, %v1626, %v1631
    %v1636 = vmul.f32 %v1619, %v1635
    %v1638 = vperm.slane %v1613, 0
    %v1640 = vmul.f32 %v1636, %v1638
    %v1642 = vperm.slane %v1614, 0
    %v1644 = vadd.f32 %v1640, %v1642
    %v1645 = vmax.f32 %v1644, 0.0
    %v1646 = vld [vmem:[%s63] sm:$0xf]
    %v1647 = vld [vmem:[%s65] sm:$0x1]
    %v1649 = vperm.slane %v1647, 0
    %v1652 = vsel %vm1347, %v1645, 0
    %v1655 = vsel %vm1372, %v1646, 0
    %1657 = vmatpush.msra.mxu0 0.0
    %1658 = vmatpush.msra.mxu0 0.0
    %1659 = vmatpush.msra.mxu0 0.0
    %1660 = vmatpush.msra.mxu0 0.0
    %1661 = vmatpush.msra.mxu0 0.0
    %1662 = vmatpush.msra.mxu0 0.0
    %1663 = vmatpush.msra.mxu0 0.0
    %1664 = vmatpush.msra.mxu0 0.0
    %1665 = vmatpush.msra.mxu0 0.0
    %1666 = vmatpush.msra.mxu0 0.0
    %1667 = vmatpush.msra.mxu0 0.0
    %1668 = vmatpush.msra.mxu0 0.0
    %1669 = vmatpush.msra.mxu0 0.0
    %1670 = vmatpush.msra.mxu0 0.0
    %1671 = vmatpush.msra.mxu0 0.0
    %1672 = vmatpush.msra.mxu0 %v1655
    %1673 = vmatmul.f32.gmra.mxu0 %v1652
    %v1674 = vpop.f32.mrf.mxu0
    %v1675 = vadd.f32 %v1649, %v1674
    %1676 = vdwg.mxu0
    %v1678 = vsel %vm1347, %v1675, 0
    %1680 = vmatpush.msra.mxu0 0.0
    %1681 = vmatpush.msra.mxu0 0.0
    %1682 = vmatpush.msra.mxu0 0.0
    %1683 = vmatpush.msra.mxu0 0.0
    %1684 = vmatpush.msra.mxu0 0.0
    %1685 = vmatpush.msra.mxu0 0.0
    %1686 = vmatpush.msra.mxu0 0.0
    %1687 = vmatpush.msra.mxu0 0.0
    %1688 = vmatpush.msra.mxu0 0.0
    %1689 = vmatpush.msra.mxu0 0.0
    %1690 = vmatpush.msra.mxu0 0.0
    %1691 = vmatpush.msra.mxu0 0.0
    %1692 = vmatpush.msra.mxu0 0.0
    %1693 = vmatpush.msra.mxu0 0.0
    %1694 = vmatpush.msra.mxu0 0.0
    %1695 = vmatpush.msra.mxu0 %v1374
    %1696 = vmatmul.f32.gmra.mxu0 %v1678
    %v1697 = vpop.f32.mrf.mxu0
    %v1698 = vadd.f32 0.0, %v1697
    %1699 = vdwg.mxu0
    %v1700 = vmul.f32 %v1698, %v1612
    %1701 = vmatpush.msra.mxu0 0.0
    %1702 = vmatpush.msra.mxu0 0.0
    %1703 = vmatpush.msra.mxu0 0.0
    %1704 = vmatpush.msra.mxu0 0.0
    %1705 = vmatpush.msra.mxu0 0.0
    %1706 = vmatpush.msra.mxu0 0.0
    %1707 = vmatpush.msra.mxu0 0.0
    %1708 = vmatpush.msra.mxu0 0.0
    %1709 = vmatpush.msra.mxu0 0.0
    %1710 = vmatpush.msra.mxu0 0.0
    %1711 = vmatpush.msra.mxu0 0.0
    %1712 = vmatpush.msra.mxu0 0.0
    %1713 = vmatpush.msra.mxu0 0.0
    %1714 = vmatpush.msra.mxu0 0.0
    %1715 = vmatpush.msra.mxu0 0.0
    %1716 = vmatpush.msra.mxu0 %v1533
    %1717 = vmatmul.f32.gmra.mxu0 %v965
    %v1718 = vpop.f32.mrf.mxu0
    %v1719 = vadd.f32 0.0, %v1718
    %1720 = vmatmul.f32.gmra.mxu0 %v968
    %v1721 = vpop.f32.mrf.mxu0
    %v1722 = vadd.f32 0.0, %v1721
    %1723 = vmatmul.f32.gmra.mxu0 %v971
    %v1724 = vpop.f32.mrf.mxu0
    %v1725 = vadd.f32 0.0, %v1724
    %1726 = vmatmul.f32.gmra.mxu0 %v974
    %v1727 = vpop.f32.mrf.mxu0
    %v1728 = vadd.f32 0.0, %v1727
    %1729 = vmatmul.f32.gmra.mxu0 %v977
    %v1730 = vpop.f32.mrf.mxu0
    %v1731 = vadd.f32 0.0, %v1730
    %1732 = vmatmul.f32.gmra.mxu0 %v980
    %v1733 = vpop.f32.mrf.mxu0
    %v1734 = vadd.f32 0.0, %v1733
    %1735 = vmatmul.f32.gmra.mxu0 %v983
    %v1736 = vpop.f32.mrf.mxu0
    %v1737 = vadd.f32 0.0, %v1736
    %1738 = vmatmul.f32.gmra.mxu0 %v986
    %v1739 = vpop.f32.mrf.mxu0
    %v1740 = vadd.f32 0.0, %v1739
    %1741 = vdwg.mxu0
    %v1743 = vsel %vm1347, %v1719, 0
    %v1746 = vsel %vm1347, %v1722, 0
    %v1749 = vsel %vm1347, %v1725, 0
    %v1752 = vsel %vm1347, %v1728, 0
    %v1755 = vsel %vm1347, %v1731, 0
    %v1758 = vsel %vm1347, %v1734, 0
    %v1761 = vsel %vm1347, %v1737, 0
    %v1764 = vsel %vm1347, %v1740, 0
    %v1767 = vsel %vm1372, %v882, 0
    %1769 = vmatpush.msra.mxu0 0.0
    %1770 = vmatpush.msra.mxu0 0.0
    %1771 = vmatpush.msra.mxu0 0.0
    %1772 = vmatpush.msra.mxu0 0.0
    %1773 = vmatpush.msra.mxu0 0.0
    %1774 = vmatpush.msra.mxu0 0.0
    %1775 = vmatpush.msra.mxu0 0.0
    %1776 = vmatpush.msra.mxu0 0.0
    %1777 = vmatpush.msra.mxu0 0.0
    %1778 = vmatpush.msra.mxu0 0.0
    %1779 = vmatpush.msra.mxu0 0.0
    %1780 = vmatpush.msra.mxu0 0.0
    %1781 = vmatpush.msra.mxu0 0.0
    %1782 = vmatpush.msra.mxu0 0.0
    %1783 = vmatpush.msra.mxu0 0.0
    %1784 = vmatpush.msra.mxu0 %v1767
    %1785 = vmatmul.f32.gmra.mxu0 %v1743
    %v1786 = vpop.f32.mrf.mxu0
    %v1787 = vadd.f32 0.0, %v1786
    %1788 = vmatmul.f32.gmra.mxu0 %v1746
    %v1789 = vpop.f32.mrf.mxu0
    %v1790 = vadd.f32 0.0, %v1789
    %1791 = vmatmul.f32.gmra.mxu0 %v1749
    %v1792 = vpop.f32.mrf.mxu0
    %v1793 = vadd.f32 0.0, %v1792
    %1794 = vmatmul.f32.gmra.mxu0 %v1752
    %v1795 = vpop.f32.mrf.mxu0
    %v1796 = vadd.f32 0.0, %v1795
    %1797 = vmatmul.f32.gmra.mxu0 %v1755
    %v1798 = vpop.f32.mrf.mxu0
    %v1799 = vadd.f32 0.0, %v1798
    %1800 = vmatmul.f32.gmra.mxu0 %v1758
    %v1801 = vpop.f32.mrf.mxu0
    %v1802 = vadd.f32 0.0, %v1801
    %1803 = vmatmul.f32.gmra.mxu0 %v1761
    %v1804 = vpop.f32.mrf.mxu0
    %v1805 = vadd.f32 0.0, %v1804
    %1806 = vmatmul.f32.gmra.mxu0 %v1764
    %v1807 = vpop.f32.mrf.mxu0
    %v1808 = vadd.f32 0.0, %v1807
    %1809 = vdwg.mxu0
    %1810 = vmatpush.msra.mxu0 0.0
    %1811 = vmatpush.msra.mxu0 0.0
    %1812 = vmatpush.msra.mxu0 0.0
    %1813 = vmatpush.msra.mxu0 0.0
    %1814 = vmatpush.msra.mxu0 0.0
    %1815 = vmatpush.msra.mxu0 0.0
    %1816 = vmatpush.msra.mxu0 0.0
    %1817 = vmatpush.msra.mxu0 0.0
    %1818 = vmatpush.msra.mxu0 0.0
    %1819 = vmatpush.msra.mxu0 0.0
    %1820 = vmatpush.msra.mxu0 0.0
    %1821 = vmatpush.msra.mxu0 0.0
    %1822 = vmatpush.msra.mxu0 0.0
    %1823 = vmatpush.msra.mxu0 0.0
    %1824 = vmatpush.msra.mxu0 0.0
    %1825 = vmatpush.msra.mxu0 %v1700
    %1826 = vmatmul.f32.gmra.mxu0 %v965
    %v1827 = vpop.f32.mrf.mxu0
    %v1828 = vadd.f32 0.0, %v1827
    %1829 = vmatmul.f32.gmra.mxu0 %v968
    %v1830 = vpop.f32.mrf.mxu0
    %v1831 = vadd.f32 0.0, %v1830
    %1832 = vmatmul.f32.gmra.mxu0 %v971
    %v1833 = vpop.f32.mrf.mxu0
    %v1834 = vadd.f32 0.0, %v1833
    %1835 = vmatmul.f32.gmra.mxu0 %v974
    %v1836 = vpop.f32.mrf.mxu0
    %v1837 = vadd.f32 0.0, %v1836
    %1838 = vmatmul.f32.gmra.mxu0 %v977
    %v1839 = vpop.f32.mrf.mxu0
    %v1840 = vadd.f32 0.0, %v1839
    %1841 = vmatmul.f32.gmra.mxu0 %v980
    %v1842 = vpop.f32.mrf.mxu0
    %v1843 = vadd.f32 0.0, %v1842
    %1844 = vmatmul.f32.gmra.mxu0 %v983
    %v1845 = vpop.f32.mrf.mxu0
    %v1846 = vadd.f32 0.0, %v1845
    %1847 = vmatmul.f32.gmra.mxu0 %v986
    %v1848 = vpop.f32.mrf.mxu0
    %v1849 = vadd.f32 0.0, %v1848
    %1850 = vdwg.mxu0
    %1859 = vrot.lane.b32.xlu0 %v1787, 48
    %v1860 = vpop.permute.xlu0 %1859
    %1861 = vrot.lane.b32.xlu0 %v1790, 48
    %v1862 = vpop.permute.xlu0 %1861
    %1863 = vrot.lane.b32.xlu0 %v1793, 48
    %v1864 = vpop.permute.xlu0 %1863
    %1865 = vrot.lane.b32.xlu0 %v1796, 48
    %v1866 = vpop.permute.xlu0 %1865
    %1867 = vrot.lane.b32.xlu0 %v1799, 48
    %v1868 = vpop.permute.xlu0 %1867
    %1869 = vrot.lane.b32.xlu0 %v1802, 48
    %v1870 = vpop.permute.xlu0 %1869
    %1871 = vrot.lane.b32.xlu0 %v1805, 48
    %v1872 = vpop.permute.xlu0 %1871
    %1873 = vrot.lane.b32.xlu0 %v1808, 48
    %v1874 = vpop.permute.xlu0 %1873
    %v1883 = vmul.f32 %v857, %v1860
    %v1884 = vmul.f32 %v860, %v1862
    %v1885 = vmul.f32 %v863, %v1864
    %v1886 = vmul.f32 %v866, %v1866
    %v1887 = vmul.f32 %v869, %v1868
    %v1888 = vmul.f32 %v872, %v1870
    %v1889 = vmul.f32 %v875, %v1872
    %v1890 = vmul.f32 %v878, %v1874
    %1899 = vrot.lane.b32.xlu0 %v1883, 80
    %v1900 = vpop.permute.xlu0 %1899
    %1901 = vrot.lane.b32.xlu0 %v1884, 80
    %v1902 = vpop.permute.xlu0 %1901
    %1903 = vrot.lane.b32.xlu0 %v1885, 80
    %v1904 = vpop.permute.xlu0 %1903
    %1905 = vrot.lane.b32.xlu0 %v1886, 80
    %v1906 = vpop.permute.xlu0 %1905
    %1907 = vrot.lane.b32.xlu0 %v1887, 80
    %v1908 = vpop.permute.xlu0 %1907
    %1909 = vrot.lane.b32.xlu0 %v1888, 80
    %v1910 = vpop.permute.xlu0 %1909
    %1911 = vrot.lane.b32.xlu0 %v1889, 80
    %v1912 = vpop.permute.xlu0 %1911
    %1913 = vrot.lane.b32.xlu0 %v1890, 80
    %v1914 = vpop.permute.xlu0 %1913
    %vm1915 = vcmask 261120
    %v1916 = vsel %vm1915, %v1900, 0
    %v1918 = vsel %vm1915, %v1902, 0
    %v1920 = vsel %vm1915, %v1904, 0
    %v1922 = vsel %vm1915, %v1906, 0
    %v1924 = vsel %vm1915, %v1908, 0
    %v1926 = vsel %vm1915, %v1910, 0
    %v1928 = vsel %vm1915, %v1912, 0
    %v1930 = vsel %vm1915, %v1914, 0
    %1932 = vmatpush.msra.mxu0 0.0
    %1933 = vmatpush.msra.mxu0 0.0
    %1934 = vmatpush.msra.mxu0 0.0
    %1935 = vmatpush.msra.mxu0 0.0
    %1936 = vmatpush.msra.mxu0 0.0
    %1937 = vmatpush.msra.mxu0 0.0
    %1938 = vmatpush.msra.mxu0 0.0
    %1939 = vmatpush.msra.mxu0 0.0
    %1940 = vmatpush.msra.mxu0 0.0
    %1941 = vmatpush.msra.mxu0 0.0
    %1942 = vmatpush.msra.mxu0 0.0
    %1943 = vmatpush.msra.mxu0 0.0
    %1944 = vmatpush.msra.mxu0 %v890
    %1945 = vmatpush.msra.mxu0 %v889
    %1946 = vmatpush.msra.mxu0 %v888
    %1947 = vmatpush.msra.mxu0 %v887
    %1948 = vmatmul.f32.gmra.mxu0 %v1916
    %v1949 = vpop.f32.mrf.mxu0
    %v1950 = vadd.f32 0.0, %v1949
    %1951 = vmatmul.f32.gmra.mxu0 %v1918
    %v1952 = vpop.f32.mrf.mxu0
    %v1953 = vadd.f32 0.0, %v1952
    %1954 = vmatmul.f32.gmra.mxu0 %v1920
    %v1955 = vpop.f32.mrf.mxu0
    %v1956 = vadd.f32 0.0, %v1955
    %1957 = vmatmul.f32.gmra.mxu0 %v1922
    %v1958 = vpop.f32.mrf.mxu0
    %v1959 = vadd.f32 0.0, %v1958
    %1960 = vmatmul.f32.gmra.mxu0 %v1924
    %v1961 = vpop.f32.mrf.mxu0
    %v1962 = vadd.f32 0.0, %v1961
    %1963 = vmatmul.f32.gmra.mxu0 %v1926
    %v1964 = vpop.f32.mrf.mxu0
    %v1965 = vadd.f32 0.0, %v1964
    %1966 = vmatmul.f32.gmra.mxu0 %v1928
    %v1967 = vpop.f32.mrf.mxu0
    %v1968 = vadd.f32 0.0, %v1967
    %1969 = vmatmul.f32.gmra.mxu0 %v1930
    %v1970 = vpop.f32.mrf.mxu0
    %v1971 = vadd.f32 0.0, %v1970
    %1972 = vdwg.mxu0
    %v1973 = vmul.f32 %v1828, %v940
    %v1974 = vmul.f32 %v1831, %v943
    %v1975 = vmul.f32 %v1834, %v946
    %v1976 = vmul.f32 %v1837, %v949
    %v1977 = vmul.f32 %v1840, %v952
    %v1978 = vmul.f32 %v1843, %v955
    %v1979 = vmul.f32 %v1846, %v958
    %v1980 = vmul.f32 %v1849, %v961
    %v1982 = vsel %vm1535, %v1973, 0
    %v1985 = vsel %vm1535, %v1974, 0
    %v1988 = vsel %vm1535, %v1975, 0
    %v1991 = vsel %vm1535, %v1976, 0
    %v1994 = vsel %vm1535, %v1977, 0
    %v1997 = vsel %vm1535, %v1978, 0
    %v2000 = vsel %vm1535, %v1979, 0
    %v2003 = vsel %vm1535, %v1980, 0
    %2005 = vmatpush.msra.mxu0 0.0
    %2006 = vmatpush.msra.mxu0 0.0
    %2007 = vmatpush.msra.mxu0 0.0
    %2008 = vmatpush.msra.mxu0 0.0
    %2009 = vmatpush.msra.mxu0 0.0
    %2010 = vmatpush.msra.mxu0 0.0
    %2011 = vmatpush.msra.mxu0 0.0
    %2012 = vmatpush.msra.mxu0 0.0
    %2013 = vmatpush.msra.mxu0 0.0
    %2014 = vmatpush.msra.mxu0 0.0
    %2015 = vmatpush.msra.mxu0 0.0
    %2016 = vmatpush.msra.mxu0 0.0
    %2017 = vmatpush.msra.mxu0 0.0
    %2018 = vmatpush.msra.mxu0 0.0
    %2019 = vmatpush.msra.mxu0 %v1540
    %2020 = vmatpush.msra.mxu0 %v891
    %2021 = vmatmul.f32.gmra.mxu0 %v1982
    %v2022 = vpop.f32.mrf.mxu0
    %v2023 = vadd.f32 0.0, %v2022
    %2024 = vmatmul.f32.gmra.mxu0 %v1985
    %v2025 = vpop.f32.mrf.mxu0
    %v2026 = vadd.f32 0.0, %v2025
    %2027 = vmatmul.f32.gmra.mxu0 %v1988
    %v2028 = vpop.f32.mrf.mxu0
    %v2029 = vadd.f32 0.0, %v2028
    %2030 = vmatmul.f32.gmra.mxu0 %v1991
    %v2031 = vpop.f32.mrf.mxu0
    %v2032 = vadd.f32 0.0, %v2031
    %2033 = vmatmul.f32.gmra.mxu0 %v1994
    %v2034 = vpop.f32.mrf.mxu0
    %v2035 = vadd.f32 0.0, %v2034
    %2036 = vmatmul.f32.gmra.mxu0 %v1997
    %v2037 = vpop.f32.mrf.mxu0
    %v2038 = vadd.f32 0.0, %v2037
    %2039 = vmatmul.f32.gmra.mxu0 %v2000
    %v2040 = vpop.f32.mrf.mxu0
    %v2041 = vadd.f32 0.0, %v2040
    %2042 = vmatmul.f32.gmra.mxu0 %v2003
    %v2043 = vpop.f32.mrf.mxu0
    %v2044 = vadd.f32 0.0, %v2043
    %2045 = vdwg.mxu0
    %v2047 = vsel %vm1347, %v2023, 0
    %v2050 = vsel %vm1347, %v2026, 0
    %v2053 = vsel %vm1347, %v2029, 0
    %v2056 = vsel %vm1347, %v2032, 0
    %v2059 = vsel %vm1347, %v2035, 0
    %v2062 = vsel %vm1347, %v2038, 0
    %v2065 = vsel %vm1347, %v2041, 0
    %v2068 = vsel %vm1347, %v2044, 0
    %2070 = vmatpush.msra.mxu0 0.0
    %2071 = vmatpush.msra.mxu0 0.0
    %2072 = vmatpush.msra.mxu0 0.0
    %2073 = vmatpush.msra.mxu0 0.0
    %2074 = vmatpush.msra.mxu0 0.0
    %2075 = vmatpush.msra.mxu0 0.0
    %2076 = vmatpush.msra.mxu0 0.0
    %2077 = vmatpush.msra.mxu0 0.0
    %2078 = vmatpush.msra.mxu0 0.0
    %2079 = vmatpush.msra.mxu0 0.0
    %2080 = vmatpush.msra.mxu0 0.0
    %2081 = vmatpush.msra.mxu0 0.0
    %2082 = vmatpush.msra.mxu0 0.0
    %2083 = vmatpush.msra.mxu0 0.0
    %2084 = vmatpush.msra.mxu0 0.0
    %2085 = vmatpush.msra.mxu0 %v1767
    %2086 = vmatmul.f32.gmra.mxu0 %v2047
    %v2087 = vpop.f32.mrf.mxu0
    %v2088 = vadd.f32 0.0, %v2087
    %2089 = vmatmul.f32.gmra.mxu0 %v2050
    %v2090 = vpop.f32.mrf.mxu0
    %v2091 = vadd.f32 0.0, %v2090
    %2092 = vmatmul.f32.gmra.mxu0 %v2053
    %v2093 = vpop.f32.mrf.mxu0
    %v2094 = vadd.f32 0.0, %v2093
    %2095 = vmatmul.f32.gmra.mxu0 %v2056
    %v2096 = vpop.f32.mrf.mxu0
    %v2097 = vadd.f32 0.0, %v2096
    %2098 = vmatmul.f32.gmra.mxu0 %v2059
    %v2099 = vpop.f32.mrf.mxu0
    %v2100 = vadd.f32 0.0, %v2099
    %2101 = vmatmul.f32.gmra.mxu0 %v2062
    %v2102 = vpop.f32.mrf.mxu0
    %v2103 = vadd.f32 0.0, %v2102
    %2104 = vmatmul.f32.gmra.mxu0 %v2065
    %v2105 = vpop.f32.mrf.mxu0
    %v2106 = vadd.f32 0.0, %v2105
    %2107 = vmatmul.f32.gmra.mxu0 %v2068
    %v2108 = vpop.f32.mrf.mxu0
    %v2109 = vadd.f32 0.0, %v2108
    %2110 = vdwg.mxu0
    %2119 = vrot.lane.b32.xlu0 %v2088, 80
    %v2120 = vpop.permute.xlu0 %2119
    %2121 = vrot.lane.b32.xlu0 %v2091, 80
    %v2122 = vpop.permute.xlu0 %2121
    %2123 = vrot.lane.b32.xlu0 %v2094, 80
    %v2124 = vpop.permute.xlu0 %2123
    %2125 = vrot.lane.b32.xlu0 %v2097, 80
    %v2126 = vpop.permute.xlu0 %2125
    %2127 = vrot.lane.b32.xlu0 %v2100, 80
    %v2128 = vpop.permute.xlu0 %2127
    %2129 = vrot.lane.b32.xlu0 %v2103, 80
    %v2130 = vpop.permute.xlu0 %2129
    %2131 = vrot.lane.b32.xlu0 %v2106, 80
    %v2132 = vpop.permute.xlu0 %2131
    %2133 = vrot.lane.b32.xlu0 %v2109, 80
    %v2134 = vpop.permute.xlu0 %2133
    %v2143 = vmul.f32 %v857, %v2120
    %v2144 = vmul.f32 %v860, %v2122
    %v2145 = vmul.f32 %v863, %v2124
    %v2146 = vmul.f32 %v866, %v2126
    %v2147 = vmul.f32 %v869, %v2128
    %v2148 = vmul.f32 %v872, %v2130
    %v2149 = vmul.f32 %v875, %v2132
    %v2150 = vmul.f32 %v878, %v2134
    %2159 = vrot.lane.b32.xlu0 %v2143, 48
    %v2160 = vpop.permute.xlu0 %2159
    %2161 = vrot.lane.b32.xlu0 %v2144, 48
    %v2162 = vpop.permute.xlu0 %2161
    %2163 = vrot.lane.b32.xlu0 %v2145, 48
    %v2164 = vpop.permute.xlu0 %2163
    %2165 = vrot.lane.b32.xlu0 %v2146, 48
    %v2166 = vpop.permute.xlu0 %2165
    %2167 = vrot.lane.b32.xlu0 %v2147, 48
    %v2168 = vpop.permute.xlu0 %2167
    %2169 = vrot.lane.b32.xlu0 %v2148, 48
    %v2170 = vpop.permute.xlu0 %2169
    %2171 = vrot.lane.b32.xlu0 %v2149, 48
    %v2172 = vpop.permute.xlu0 %2171
    %2173 = vrot.lane.b32.xlu0 %v2150, 48
    %v2174 = vpop.permute.xlu0 %2173
    %v2175 = vsel %vm1915, %v2160, 0
    %v2177 = vsel %vm1915, %v2162, 0
    %v2179 = vsel %vm1915, %v2164, 0
    %v2181 = vsel %vm1915, %v2166, 0
    %v2183 = vsel %vm1915, %v2168, 0
    %v2185 = vsel %vm1915, %v2170, 0
    %v2187 = vsel %vm1915, %v2172, 0
    %v2189 = vsel %vm1915, %v2174, 0
    %2191 = vmatpush.msra.mxu0 0.0
    %2192 = vmatpush.msra.mxu0 0.0
    %2193 = vmatpush.msra.mxu0 0.0
    %2194 = vmatpush.msra.mxu0 0.0
    %2195 = vmatpush.msra.mxu0 0.0
    %2196 = vmatpush.msra.mxu0 0.0
    %2197 = vmatpush.msra.mxu0 0.0
    %2198 = vmatpush.msra.mxu0 0.0
    %2199 = vmatpush.msra.mxu0 0.0
    %2200 = vmatpush.msra.mxu0 0.0
    %2201 = vmatpush.msra.mxu0 0.0
    %2202 = vmatpush.msra.mxu0 0.0
    %2203 = vmatpush.msra.mxu0 %v890
    %2204 = vmatpush.msra.mxu0 %v889
    %2205 = vmatpush.msra.mxu0 %v888
    %2206 = vmatpush.msra.mxu0 %v887
    %2207 = vmatmul.f32.gmra.mxu0 %v2175
    %v2208 = vpop.f32.mrf.mxu0
    %v2209 = vadd.f32 0.0, %v2208
    %2210 = vmatmul.f32.gmra.mxu0 %v2177
    %v2211 = vpop.f32.mrf.mxu0
    %v2212 = vadd.f32 0.0, %v2211
    %2213 = vmatmul.f32.gmra.mxu0 %v2179
    %v2214 = vpop.f32.mrf.mxu0
    %v2215 = vadd.f32 0.0, %v2214
    %2216 = vmatmul.f32.gmra.mxu0 %v2181
    %v2217 = vpop.f32.mrf.mxu0
    %v2218 = vadd.f32 0.0, %v2217
    %2219 = vmatmul.f32.gmra.mxu0 %v2183
    %v2220 = vpop.f32.mrf.mxu0
    %v2221 = vadd.f32 0.0, %v2220
    %2222 = vmatmul.f32.gmra.mxu0 %v2185
    %v2223 = vpop.f32.mrf.mxu0
    %v2224 = vadd.f32 0.0, %v2223
    %2225 = vmatmul.f32.gmra.mxu0 %v2187
    %v2226 = vpop.f32.mrf.mxu0
    %v2227 = vadd.f32 0.0, %v2226
    %2228 = vmatmul.f32.gmra.mxu0 %v2189
    %v2229 = vpop.f32.mrf.mxu0
    %v2230 = vadd.f32 0.0, %v2229
    %2231 = vdwg.mxu0
    %2232 = vmatpush.msra.mxu0 0.0
    %2233 = vmatpush.msra.mxu0 0.0
    %2234 = vmatpush.msra.mxu0 0.0
    %2235 = vmatpush.msra.mxu0 0.0
    %2236 = vmatpush.msra.mxu0 0.0
    %2237 = vmatpush.msra.mxu0 0.0
    %2238 = vmatpush.msra.mxu0 0.0
    %2239 = vmatpush.msra.mxu0 0.0
    %2240 = vmatpush.msra.mxu0 %v1971
    %2241 = vmatpush.msra.mxu0 %v1968
    %2242 = vmatpush.msra.mxu0 %v1965
    %2243 = vmatpush.msra.mxu0 %v1962
    %2244 = vmatpush.msra.mxu0 %v1959
    %2245 = vmatpush.msra.mxu0 %v1956
    %2246 = vmatpush.msra.mxu0 %v1953
    %2247 = vmatpush.msra.mxu0 %v1950
    %2248 = vmatmul.f32.gmra.mxu0 %v1296
    %v2249 = vpop.f32.mrf.mxu0
    %v2250 = vadd.f32 0.0, %v2249
    %2251 = vdwg.mxu0
    %v2252 = vmul.f32 %v2250, 0.2820948
    %2253 = vmatpush.msra.mxu0 0.0
    %2254 = vmatpush.msra.mxu0 0.0
    %2255 = vmatpush.msra.mxu0 0.0
    %2256 = vmatpush.msra.mxu0 0.0
    %2257 = vmatpush.msra.mxu0 0.0
    %2258 = vmatpush.msra.mxu0 0.0
    %2259 = vmatpush.msra.mxu0 0.0
    %2260 = vmatpush.msra.mxu0 0.0
    %2261 = vmatpush.msra.mxu0 %v2230
    %2262 = vmatpush.msra.mxu0 %v2227
    %2263 = vmatpush.msra.mxu0 %v2224
    %2264 = vmatpush.msra.mxu0 %v2221
    %2265 = vmatpush.msra.mxu0 %v2218
    %2266 = vmatpush.msra.mxu0 %v2215
    %2267 = vmatpush.msra.mxu0 %v2212
    %2268 = vmatpush.msra.mxu0 %v2209
    %2269 = vmatmul.f32.gmra.mxu0 %v1296
    %v2270 = vpop.f32.mrf.mxu0
    %v2271 = vadd.f32 0.0, %v2270
    %2272 = vdwg.mxu0
    %v2273 = vadd.f32 %v2252, %v2271
    %v2274 = vld [vmem:[%s49] sm:$0xf]
    %v2276 = vsel %vm1347, %v1533, 0
    %v2279 = vsel %vm1372, %v2274, 0
    %2281 = vmatpush.msra.mxu0 0.0
    %2282 = vmatpush.msra.mxu0 0.0
    %2283 = vmatpush.msra.mxu0 0.0
    %2284 = vmatpush.msra.mxu0 0.0
    %2285 = vmatpush.msra.mxu0 0.0
    %2286 = vmatpush.msra.mxu0 0.0
    %2287 = vmatpush.msra.mxu0 0.0
    %2288 = vmatpush.msra.mxu0 0.0
    %2289 = vmatpush.msra.mxu0 0.0
    %2290 = vmatpush.msra.mxu0 0.0
    %2291 = vmatpush.msra.mxu0 0.0
    %2292 = vmatpush.msra.mxu0 0.0
    %2293 = vmatpush.msra.mxu0 0.0
    %2294 = vmatpush.msra.mxu0 0.0
    %2295 = vmatpush.msra.mxu0 0.0
    %2296 = vmatpush.msra.mxu0 %v2279
    %2297 = vmatmul.f32.gmra.mxu0 %v2276
    %v2298 = vpop.f32.mrf.mxu0
    %v2299 = vadd.f32 0.0, %v2298
    %2300 = vdwg.mxu0
    %v2301 = vadd.f32 %v2273, %v2299
    %v2302 = vsel %vm963, %v2301, -inf
    %v2303 = vrot.slane %v2302, 4
    %v2304 = vmax.f32 %v2302, %v2303
    %v2305 = vrot.slane %v2304, 2
    %v2306 = vmax.f32 %v2304, %v2305
    %v2307 = vrot.slane %v2306, 1
    %v2308 = vmax.f32 %v2306, %v2307
    %v2309 = vld [vmem:[%s67] sm:$0xff]
    %v2310 = vld [vmem:[%s69] sm:$0x1]
    %v2312 = vsel %vm963, %v2308, 0
    %2314 = vmatpush.msra.mxu0 0.0
    %2315 = vmatpush.msra.mxu0 0.0
    %2316 = vmatpush.msra.mxu0 0.0
    %2317 = vmatpush.msra.mxu0 0.0
    %2318 = vmatpush.msra.mxu0 0.0
    %2319 = vmatpush.msra.mxu0 0.0
    %2320 = vmatpush.msra.mxu0 0.0
    %2321 = vmatpush.msra.mxu0 0.0
    %2322 = vmatpush.msra.mxu0 0.0
    %2323 = vmatpush.msra.mxu0 0.0
    %2324 = vmatpush.msra.mxu0 0.0
    %2325 = vmatpush.msra.mxu0 0.0
    %2326 = vmatpush.msra.mxu0 0.0
    %2327 = vmatpush.msra.mxu0 0.0
    %2328 = vmatpush.msra.mxu0 0.0
    %2329 = vmatpush.msra.mxu0 %v2309
    %2330 = vmatmul.f32.gmra.mxu0 %v2312
    %v2331 = vpop.f32.mrf.mxu0
    %v2332 = vadd.f32 %v2310, %v2331
    %2333 = vdwg.mxu0
    %v2334 = vmax.f32 %v2332, 0.0
    %v2335 = vld [vmem:[%s71] sm:$0xff]
    %v2336 = vld [vmem:[#allocation2] sm:$0x1]
    %v2338 = vsel %vm963, %v2334, 0
    %2340 = vmatpush.msra.mxu0 0.0
    %2341 = vmatpush.msra.mxu0 0.0
    %2342 = vmatpush.msra.mxu0 0.0
    %2343 = vmatpush.msra.mxu0 0.0
    %2344 = vmatpush.msra.mxu0 0.0
    %2345 = vmatpush.msra.mxu0 0.0
    %2346 = vmatpush.msra.mxu0 0.0
    %2347 = vmatpush.msra.mxu0 0.0
    %2348 = vmatpush.msra.mxu0 0.0
    %2349 = vmatpush.msra.mxu0 0.0
    %2350 = vmatpush.msra.mxu0 0.0
    %2351 = vmatpush.msra.mxu0 0.0
    %2352 = vmatpush.msra.mxu0 0.0
    %2353 = vmatpush.msra.mxu0 0.0
    %2354 = vmatpush.msra.mxu0 0.0
    %2355 = vmatpush.msra.mxu0 %v2335
    %2356 = vmatmul.f32.gmra.mxu0 %v2338
    %v2357 = vpop.f32.mrf.mxu0
    %v2358 = vadd.f32 %v2336, %v2357
    %2359 = vdwg.mxu0
    %vm2360 = vcmask 0
    %2361 = vst.msk [vmem:[#allocation3] sm:$0x1] %vm2360, %v2358
    // Predicated region
    $region150: #{tfn_forward.1} parent=1 // pred_check
      _
    $region151: #{tfn_forward.1} parent=1 // pred_check_branch
      %2363 = sbr.rel (0) target = $region153
    $region152: #{tfn_forward.1} parent=1 // pred_region
      %2365 = vsyncadd [#allocation4], 0
      %s2367 = sshll.u32 [#allocation3], 4
      %s2368 = int_to_ptr.vmem [resolvable:$true] %s2367
      %s2369 = sshll.u32 %s75, 4
      %s2370 = int_to_ptr.hbm [resolvable:$true] %s2369
      %2372 = dma.vmem_to_hbm [thread:$0]  %s2368, 16, %s2370, [#allocation4]
    $region153: #{tfn_forward.1} parent=1 // pred_fallthru
      _
    // Predicated region
    $region154: #{tfn_forward.1} parent=1 // pred_check
      _
    $region155: #{tfn_forward.1} parent=1 // pred_check_branch
      %2374 = sbr.rel (0) target = $region157
    $region156: #{tfn_forward.1} parent=1 // pred_region
      %2376 = dma.done [#allocation4], 16
    $region157: #{tfn_forward.1} parent=1 // pred_fallthru
      _
    %2377 = vsyncpa [#allocation4], 1

</llo_original>
